<compile_context>
chip_gen: v7x
topology: tpu7x:2x2x1
jax: 0.10.0
libtpu: 0.0.40
codegen_flags: <defaults>
</compile_context>

<pallas_src>
import functools

import jax
import jax.numpy as jnp
from jax.experimental import pallas as pl
from jax.experimental.pallas import tpu as pltpu

LANE = 128      # lane width: last dims padded to multiples of this
SUBLANE = 8     # f32 sublane packing for the batch tile


def _round_up(x, m):
    return ((x + m - 1) // m) * m


def _tpu_config():
    """Generation-aware (batch_tile_cap, vmem_limit_bytes) with safe fallbacks."""
    vmem_cap = 64 * 1024 * 1024          # conservative default = v7x physical VMEM
    gen = 6
    try:
        info = pltpu.get_tpu_info()
        vmem_cap = int(getattr(info, "vmem_capacity_bytes", vmem_cap))
    except Exception:
        pass
    try:
        kind = jax.devices()[0].device_kind.lower()
        for g in (7, 6, 5, 4):
            if ("v%d" % g) in kind:
                gen = g
                break
    except Exception:
        pass
    # v5e MXU passes are 128-wide; v6e/v7x are 256-wide -> larger batch tiles pay off.
    tm_cap = 128 if gen <= 5 else 256
    # ~75% of physical VMEM: ~48 MiB on v7x (64 MiB), ~96 MiB on v5e/v6e (128 MiB).
    vmem_limit = max(32 * 1024 * 1024, min(vmem_cap * 3 // 4, 110 * 1024 * 1024))
    return tm_cap, int(vmem_limit)


def _pad_params(params, weight_dtype):
    """Zero-pad (w, b) to lane multiples; weights in weight_dtype, biases in f32."""
    padded = []
    for w, b in params:
        fin, fout = w.shape
        fin_p, fout_p = _round_up(fin, LANE), _round_up(fout, LANE)
        w_p = jnp.pad(w.astype(weight_dtype), ((0, fin_p - fin), (0, fout_p - fout)))
        b_p = jnp.pad(b.reshape(1, fout).astype(jnp.float32),
                      ((0, 0), (0, fout_p - fout)))
        padded.append((w_p, b_p))
    return padded


# ----------------------------- fused (resident) path ------------------------

def _mlp_fused_kernel(*refs, n_layers_total):
    """refs = (x_ref, w0, b0, ..., w_{L-1}, b_{L-1}, o_ref).

    One batch tile through the whole network; the activation stays in
    VMEM/vregs for all layers.
    """
    x_ref, o_ref, wb = refs[0], refs[-1], refs[1:-1]
    h = x_ref[...]
    for i in range(n_layers_total):
        w = wb[2 * i][...]            # (fin_pad, fout_pad), f32 or bf16
        b = wb[2 * i + 1][...]        # (1, fout_pad), f32 — broadcasts over batch
        y = jnp.dot(h, w, preferred_element_type=jnp.float32) + b   # MXU, f32 acc
        if i < n_layers_total - 1:
            h = jnp.maximum(y, 0.0).astype(w.dtype)   # ReLU on f32 acc, one cast/layer
        else:
            h = y
    o_ref[...] = h.astype(o_ref.dtype)
    # TODO(synk): for very large hidden dims, tile each layer over fout chunks
    # with an explicit VMEM scratch + lax.fori_loop(unroll=True) to bound vreg
    # live ranges instead of materializing the full (tm, H) f32 activation.


@functools.partial(jax.jit, static_argnames=("tm", "single_buffer", "vmem_limit"))
def _mlp_fused(x, padded_params, *, tm, single_buffer, vmem_limit):
    B, d_in = x.shape
    d_in_pad = padded_params[0][0].shape[0]
    out_dim_pad = padded_params[-1][0].shape[1]
    B_pad = _round_up(B, tm)

    x_p = jnp.pad(x, ((0, B_pad - B), (0, d_in_pad - d_in)))
    x_p = x_p.astype(padded_params[0][0].dtype)   # feed MXU the weights' dtype

    wb_kwargs = dict(pipeline_mode=pl.Buffered(1)) if single_buffer else {}

    in_specs = [pl.BlockSpec((tm, d_in_pad), lambda i: (i, 0))]
    flat = []
    for w_p, b_p in padded_params:
        fin_p, fout_p = w_p.shape
        # Whole (padded) weight/bias resident; same block every grid step.
        in_specs.append(pl.BlockSpec((fin_p, fout_p), lambda i: (0, 0), **wb_kwargs))
        in_specs.append(pl.BlockSpec((1, fout_p), lambda i: (0, 0), **wb_kwargs))
        flat += [w_p, b_p]

    kernel = functools.partial(_mlp_fused_kernel, n_layers_total=len(padded_params))
    out_p = pl.pallas_call(
        kernel,
        out_shape=jax.ShapeDtypeStruct((B_pad, out_dim_pad), x.dtype),
        grid=(B_pad // tm,),
        in_specs=in_specs,
        out_specs=pl.BlockSpec((tm, out_dim_pad), lambda i: (i, 0)),
        compiler_params=pltpu.CompilerParams(
            dimension_semantics=("parallel",),    # shard batch tiles across TCs (v7x)
            vmem_limit_bytes=vmem_limit,
        ),
    )(x_p, *flat)
    return out_p


# --------------------- streaming fallback (per-layer, K-tiled) --------------

def _linear_kernel(x_ref, w_ref, b_ref, o_ref, acc_ref, *, apply_relu):
    @pl.when(pl.program_id(1) == 0)
    def _():
        acc_ref[...] = jnp.zeros_like(acc_ref)

    acc_ref[...] += jnp.dot(x_ref[...], w_ref[...],
                            preferred_element_type=jnp.float32)

    @pl.when(pl.program_id(1) == pl.num_programs(1) - 1)
    def _():
        y = acc_ref[...] + b_ref[...]
        if apply_relu:
            y = jnp.maximum(y, 0.0)
        o_ref[...] = y.astype(o_ref.dtype)


def _linear_layer(x_p, w_p, b_p, *, tm, apply_relu, vmem_limit, out_dtype):
    B_pad, K = x_p.shape
    _, N = w_p.shape
    tk = 512 if K % 512 == 0 else (256 if K % 256 == 0 else 128)
    tk = min(tk, K)
    # TODO(synk): also tile over N (output features) for extremely wide layers.
    kernel = functools.partial(_linear_kernel, apply_relu=apply_relu)
    return pl.pallas_call(
        kernel,
        out_shape=jax.ShapeDtypeStruct((B_pad, N), out_dtype),
        grid=(B_pad // tm, K // tk),
        in_specs=[pl.BlockSpec((tm, tk), lambda i, k: (i, k)),
                  pl.BlockSpec((tk, N), lambda i, k: (k, 0)),
                  pl.BlockSpec((1, N), lambda i, k: (0, 0))],
        out_specs=pl.BlockSpec((tm, N), lambda i, k: (i, 0)),
        scratch_shapes=[pltpu.VMEM((tm, N), jnp.float32)],
        compiler_params=pltpu.CompilerParams(
            dimension_semantics=("parallel", "arbitrary"),
            vmem_limit_bytes=vmem_limit,
        ),
    )(x_p, w_p, b_p)


@functools.partial(jax.jit, static_argnames=("tm", "vmem_limit"))
def _mlp_streamed(x, padded_params, *, tm, vmem_limit):
    B, d_in = x.shape
    d_in_pad = padded_params[0][0].shape[0]
    B_pad = _round_up(B, tm)
    h = jnp.pad(x, ((0, B_pad - B), (0, d_in_pad - d_in)))
    h = h.astype(padded_params[0][0].dtype)
    n_total = len(padded_params)
    for i, (w_p, b_p) in enumerate(padded_params):
        last = i == n_total - 1
        h = _linear_layer(h, w_p, b_p, tm=tm, apply_relu=not last,
                          vmem_limit=vmem_limit,
                          out_dtype=(x.dtype if last else w_p.dtype))
    return h


# --------------------------------- wrapper -----------------------------------

def mlp_forward(x, params, *, weight_dtype=jnp.float32):
    """MLP forward matching nn.Linear semantics: y = x @ w + b per layer,
    ReLU after every layer except the last.

    x: (B, input_dim); params: list of (w, b), w: (fin, fout), b: (1, fout).
    """
    B, _ = x.shape
    out_dim = params[-1][0].shape[1]
    tm_cap, vmem_limit = _tpu_config()

    d_in_pad = _round_up(params[0][0].shape[0], LANE)
    out_dim_pad = _round_up(out_dim, LANE)

    # Batch tile: multiple of 8 sublanes, capped to the MXU-friendly size.
    tm = min(_round_up(B, SUBLANE), tm_cap)
    # Megacore (v7x): ensure >= 2 grid steps when the batch allows it so both
    # TensorCores get work. No-op on single-TC chips / tiny batches.
    if _round_up(B, tm) == tm and _round_up(B, SUBLANE) >= 2 * SUBLANE:
        tm = _round_up((B + 1) // 2, SUBLANE)

    padded_params = _pad_params(params, weight_dtype)

    # VMEM accounting: double-buffered x/out tiles + resident weights/biases.
    wb_bytes = sum(int(w.size) * w.dtype.itemsize + int(b.size) * b.dtype.itemsize
                   for w, b in padded_params)
    act_bytes = 2 * tm * (d_in_pad + out_dim_pad) * 4
    budget = int(vmem_limit * 0.9)

    attempts = []
    if act_bytes + 1 * wb_bytes <= budget:
        attempts.append(("fused", True))      # single-buffered resident weights
    if act_bytes + 2 * wb_bytes <= budget:
        attempts.append(("fused", False))     # default double-buffering fallback
    attempts.append(("streamed", False))      # K-tiled per-layer streaming

    last_err = None
    for mode, single_buffer in attempts:
        try:
            if mode == "fused":
                out_p = _mlp_fused(x, padded_params, tm=tm,
                                   single_buffer=single_buffer,
                                   vmem_limit=vmem_limit)
            else:
                out_p = _mlp_streamed(x, padded_params, tm=tm,
                                      vmem_limit=vmem_limit)
            out_p = jax.block_until_ready(out_p)
            return out_p[:B, :out_dim]
        except Exception as e:   # e.g. Buffered(1) unsupported / VMEM OOM at compile
            last_err = e
    raise last_err


# ----------------------------- reference & demo ------------------------------

def init_mlp_params(key, input_dim, hidden_dim, output_dim, n_layers):
    """Synthetic init mimicking nn.Linear's U(-1/sqrt(fan_in), 1/sqrt(fan_in))."""
    dims = ([(input_dim, hidden_dim)]
            + [(hidden_dim, hidden_dim)] * (n_layers - 1)
            + [(hidden_dim, output_dim)])
    params = []
    for i, (fin, fout) in enumerate(dims):
        kw, kb = jax.random.split(jax.random.fold_in(key, i))
        bound = 1.0 / (fin ** 0.5)
        w = jax.random.uniform(kw, (fin, fout), jnp.float32, -bound, bound)
        b = jax.random.uniform(kb, (1, fout), jnp.float32, -bound, bound)
        params.append((w, b))
    return params


def mlp_reference(x, params):
    n = len(params)
    for i, (w, b) in enumerate(params):
        x = x @ w + b
        if i < n - 1:
            x = jnp.maximum(x, 0.0)
    return x


if __name__ == "__main__":
    input_dim, hidden_dim, output_dim, n_layers = 16, 32, 8, 3
    batch = 8

    key = jax.random.PRNGKey(0)
    kx, kp = jax.random.split(key)
    x = jax.random.normal(kx, (batch, input_dim), jnp.float32)
    params = init_mlp_params(kp, input_dim, hidden_dim, output_dim, n_layers)

    ref = mlp_reference(x, params)

    # f32 path: tight numerical check against the pure-JAX reference.
    out_f32 = jax.block_until_ready(mlp_forward(x, params))
    assert out_f32.shape == (batch, output_dim)
    assert jnp.allclose(out_f32, ref, atol=1e-5, rtol=1e-5), "f32 mismatch vs reference"

    # bf16 weights/activations (fast MXU path on v6e/v7x): loose tolerance.
    out_bf16 = jax.block_until_ready(mlp_forward(x, params, weight_dtype=jnp.bfloat16))
    assert out_bf16.shape == (batch, output_dim)
    assert jnp.allclose(out_bf16, ref, atol=5e-2, rtol=5e-2), "bf16 mismatch vs reference"

    print("KERNEL_OK")
</pallas_src>

<mosaic_0001>
module attributes {stable_mosaic.version = 11 : i64} {
  func.func @_mlp_fused_kernel(%arg0: i32, %arg1: memref<8x128xf32, #tpu.memory_space<vmem>>, %arg2: memref<128x128xf32, #tpu.memory_space<vmem>>, %arg3: memref<1x128xf32, #tpu.memory_space<vmem>>, %arg4: memref<128x128xf32, #tpu.memory_space<vmem>>, %arg5: memref<1x128xf32, #tpu.memory_space<vmem>>, %arg6: memref<128x128xf32, #tpu.memory_space<vmem>>, %arg7: memref<1x128xf32, #tpu.memory_space<vmem>>, %arg8: memref<128x128xf32, #tpu.memory_space<vmem>>, %arg9: memref<1x128xf32, #tpu.memory_space<vmem>>, %arg10: memref<8x128xf32, #tpu.memory_space<vmem>>) attributes {dimension_semantics = [#tpu.dimension_semantics<parallel>], iteration_bounds = array<i64: 1>, scalar_prefetch = 0 : i64, scratch_operands = 0 : i64, tpu.core_type = #tpu.core_type<tc>, window_params = [{transform_indices = @transform_0, window_bounds = array<i64: 8, 128>}, {pipeline_mode = #tpu.pipeline_mode<synchronous>, transform_indices = @transform_1, window_bounds = array<i64: 128, 128>}, {pipeline_mode = #tpu.pipeline_mode<synchronous>, transform_indices = @transform_2, window_bounds = array<i64: 1, 128>}, {pipeline_mode = #tpu.pipeline_mode<synchronous>, transform_indices = @transform_3, window_bounds = array<i64: 128, 128>}, {pipeline_mode = #tpu.pipeline_mode<synchronous>, transform_indices = @transform_4, window_bounds = array<i64: 1, 128>}, {pipeline_mode = #tpu.pipeline_mode<synchronous>, transform_indices = @transform_5, window_bounds = array<i64: 128, 128>}, {pipeline_mode = #tpu.pipeline_mode<synchronous>, transform_indices = @transform_6, window_bounds = array<i64: 1, 128>}, {pipeline_mode = #tpu.pipeline_mode<synchronous>, transform_indices = @transform_7, window_bounds = array<i64: 128, 128>}, {pipeline_mode = #tpu.pipeline_mode<synchronous>, transform_indices = @transform_8, window_bounds = array<i64: 1, 128>}, {transform_indices = @transform_9, window_bounds = array<i64: 8, 128>}]} {
    %c0 = arith.constant 0 : index
    %c0_0 = arith.constant 0 : index
    %0 = vector.load %arg1[%c0, %c0_0] : memref<8x128xf32, #tpu.memory_space<vmem>>, vector<8x128xf32>
    %c0_1 = arith.constant 0 : index
    %c0_2 = arith.constant 0 : index
    %1 = vector.load %arg2[%c0_1, %c0_2] : memref<128x128xf32, #tpu.memory_space<vmem>>, vector<128x128xf32>
    %c0_3 = arith.constant 0 : index
    %c0_4 = arith.constant 0 : index
    %2 = vector.load %arg3[%c0_3, %c0_4] : memref<1x128xf32, #tpu.memory_space<vmem>>, vector<1x128xf32>
    %cst = arith.constant dense<0.000000e+00> : vector<8x128xf32>
    %3 = tpu.matmul %0, %1, %cst {dimension_numbers = #tpu.dot_dimension_numbers<[1], [0], [0], [1], [0, 0, 1, 1], [], []>} : vector<8x128xf32>, vector<128x128xf32>, vector<8x128xf32> -> vector<8x128xf32>
    %4 = vector.broadcast %2 : vector<1x128xf32> to vector<8x128xf32>
    %5 = arith.addf %3, %4 : vector<8x128xf32>
    %cst_5 = arith.constant 0.000000e+00 : f32
    %6 = vector.broadcast %cst_5 : f32 to vector<8x128xf32>
    %7 = arith.maximumf %5, %6 : vector<8x128xf32>
    %c0_6 = arith.constant 0 : index
    %c0_7 = arith.constant 0 : index
    %8 = vector.load %arg4[%c0_6, %c0_7] : memref<128x128xf32, #tpu.memory_space<vmem>>, vector<128x128xf32>
    %c0_8 = arith.constant 0 : index
    %c0_9 = arith.constant 0 : index
    %9 = vector.load %arg5[%c0_8, %c0_9] : memref<1x128xf32, #tpu.memory_space<vmem>>, vector<1x128xf32>
    %cst_10 = arith.constant dense<0.000000e+00> : vector<8x128xf32>
    %10 = tpu.matmul %7, %8, %cst_10 {dimension_numbers = #tpu.dot_dimension_numbers<[1], [0], [0], [1], [0, 0, 1, 1], [], []>} : vector<8x128xf32>, vector<128x128xf32>, vector<8x128xf32> -> vector<8x128xf32>
    %11 = vector.broadcast %9 : vector<1x128xf32> to vector<8x128xf32>
    %12 = arith.addf %10, %11 : vector<8x128xf32>
    %cst_11 = arith.constant 0.000000e+00 : f32
    %13 = vector.broadcast %cst_11 : f32 to vector<8x128xf32>
    %14 = arith.maximumf %12, %13 : vector<8x128xf32>
    %c0_12 = arith.constant 0 : index
    %c0_13 = arith.constant 0 : index
    %15 = vector.load %arg6[%c0_12, %c0_13] : memref<128x128xf32, #tpu.memory_space<vmem>>, vector<128x128xf32>
    %c0_14 = arith.constant 0 : index
    %c0_15 = arith.constant 0 : index
    %16 = vector.load %arg7[%c0_14, %c0_15] : memref<1x128xf32, #tpu.memory_space<vmem>>, vector<1x128xf32>
    %cst_16 = arith.constant dense<0.000000e+00> : vector<8x128xf32>
    %17 = tpu.matmul %14, %15, %cst_16 {dimension_numbers = #tpu.dot_dimension_numbers<[1], [0], [0], [1], [0, 0, 1, 1], [], []>} : vector<8x128xf32>, vector<128x128xf32>, vector<8x128xf32> -> vector<8x128xf32>
    %18 = vector.broadcast %16 : vector<1x128xf32> to vector<8x128xf32>
    %19 = arith.addf %17, %18 : vector<8x128xf32>
    %cst_17 = arith.constant 0.000000e+00 : f32
    %20 = vector.broadcast %cst_17 : f32 to vector<8x128xf32>
    %21 = arith.maximumf %19, %20 : vector<8x128xf32>
    %c0_18 = arith.constant 0 : index
    %c0_19 = arith.constant 0 : index
    %22 = vector.load %arg8[%c0_18, %c0_19] : memref<128x128xf32, #tpu.memory_space<vmem>>, vector<128x128xf32>
    %c0_20 = arith.constant 0 : index
    %c0_21 = arith.constant 0 : index
    %23 = vector.load %arg9[%c0_20, %c0_21] : memref<1x128xf32, #tpu.memory_space<vmem>>, vector<1x128xf32>
    %cst_22 = arith.constant dense<0.000000e+00> : vector<8x128xf32>
    %24 = tpu.matmul %21, %22, %cst_22 {dimension_numbers = #tpu.dot_dimension_numbers<[1], [0], [0], [1], [0, 0, 1, 1], [], []>} : vector<8x128xf32>, vector<128x128xf32>, vector<8x128xf32> -> vector<8x128xf32>
    %25 = vector.broadcast %23 : vector<1x128xf32> to vector<8x128xf32>
    %26 = arith.addf %24, %25 : vector<8x128xf32>
    %c0_23 = arith.constant 0 : index
    %c0_24 = arith.constant 0 : index
    %27 = vector.load %arg10[%c0_23, %c0_24] : memref<8x128xf32, #tpu.memory_space<vmem>>, vector<8x128xf32>
    tpu.vector_store %arg10[%c0_23, %c0_24], %26 {strides = array<i32>} : memref<8x128xf32, #tpu.memory_space<vmem>>, vector<8x128xf32>,
    return
  }
  func.func @transform_0(%arg0: i32) -> (i32, i32) {
    %c0_i32 = arith.constant 0 : i32
    %c0_i32_0 = arith.constant 0 : i32
    return %arg0, %c0_i32 : i32, i32
  }
  func.func @transform_1(%arg0: i32) -> (i32, i32) {
    %c0_i32 = arith.constant 0 : i32
    %c0_i32_0 = arith.constant 0 : i32
    %c0_i32_1 = arith.constant 0 : i32
    return %c0_i32, %c0_i32_0 : i32, i32
  }
  func.func @transform_2(%arg0: i32) -> (i32, i32) {
    %c0_i32 = arith.constant 0 : i32
    %c0_i32_0 = arith.constant 0 : i32
    %c0_i32_1 = arith.constant 0 : i32
    return %c0_i32, %c0_i32_0 : i32, i32
  }
  func.func @transform_3(%arg0: i32) -> (i32, i32) {
    %c0_i32 = arith.constant 0 : i32
    %c0_i32_0 = arith.constant 0 : i32
    %c0_i32_1 = arith.constant 0 : i32
    return %c0_i32, %c0_i32_0 : i32, i32
  }
  func.func @transform_4(%arg0: i32) -> (i32, i32) {
    %c0_i32 = arith.constant 0 : i32
    %c0_i32_0 = arith.constant 0 : i32
    %c0_i32_1 = arith.constant 0 : i32
    return %c0_i32, %c0_i32_0 : i32, i32
  }
  func.func @transform_5(%arg0: i32) -> (i32, i32) {
    %c0_i32 = arith.constant 0 : i32
    %c0_i32_0 = arith.constant 0 : i32
    %c0_i32_1 = arith.constant 0 : i32
    return %c0_i32, %c0_i32_0 : i32, i32
  }
  func.func @transform_6(%arg0: i32) -> (i32, i32) {
    %c0_i32 = arith.constant 0 : i32
    %c0_i32_0 = arith.constant 0 : i32
    %c0_i32_1 = arith.constant 0 : i32
    return %c0_i32, %c0_i32_0 : i32, i32
  }
  func.func @transform_7(%arg0: i32) -> (i32, i32) {
    %c0_i32 = arith.constant 0 : i32
    %c0_i32_0 = arith.constant 0 : i32
    %c0_i32_1 = arith.constant 0 : i32
    return %c0_i32, %c0_i32_0 : i32, i32
  }
  func.func @transform_8(%arg0: i32) -> (i32, i32) {
    %c0_i32 = arith.constant 0 : i32
    %c0_i32_0 = arith.constant 0 : i32
    %c0_i32_1 = arith.constant 0 : i32
    return %c0_i32, %c0_i32_0 : i32, i32
  }
  func.func @transform_9(%arg0: i32) -> (i32, i32) {
    %c0_i32 = arith.constant 0 : i32
    %c0_i32_0 = arith.constant 0 : i32
    return %arg0, %c0_i32 : i32, i32
  }
}

module attributes {stable_mosaic.version = 11 : i64} {
  func.func @_mlp_fused_kernel(%arg0: i32, %arg1: memref<8x128xf32, #tpu.memory_space<vmem>>, %arg2: memref<128x128xf32, #tpu.memory_space<vmem>>, %arg3: memref<1x128xf32, #tpu.memory_space<vmem>>, %arg4: memref<128x128xf32, #tpu.memory_space<vmem>>, %arg5: memref<1x128xf32, #tpu.memory_space<vmem>>, %arg6: memref<128x128xf32, #tpu.memory_space<vmem>>, %arg7: memref<1x128xf32, #tpu.memory_space<vmem>>, %arg8: memref<128x128xf32, #tpu.memory_space<vmem>>, %arg9: memref<1x128xf32, #tpu.memory_space<vmem>>, %arg10: memref<8x128xf32, #tpu.memory_space<vmem>>) attributes {dimension_semantics = [#tpu.dimension_semantics<parallel>], iteration_bounds = array<i64: 1>, scalar_prefetch = 0 : i64, scratch_operands = 0 : i64, tpu.core_type = #tpu.core_type<tc>, window_params = [{transform_indices = @transform_0, window_bounds = array<i64: 8, 128>}, {pipeline_mode = #tpu.pipeline_mode<synchronous>, transform_indices = @transform_1, window_bounds = array<i64: 128, 128>}, {pipeline_mode = #tpu.pipeline_mode<synchronous>, transform_indices = @transform_2, window_bounds = array<i64: 1, 128>}, {pipeline_mode = #tpu.pipeline_mode<synchronous>, transform_indices = @transform_3, window_bounds = array<i64: 128, 128>}, {pipeline_mode = #tpu.pipeline_mode<synchronous>, transform_indices = @transform_4, window_bounds = array<i64: 1, 128>}, {pipeline_mode = #tpu.pipeline_mode<synchronous>, transform_indices = @transform_5, window_bounds = array<i64: 128, 128>}, {pipeline_mode = #tpu.pipeline_mode<synchronous>, transform_indices = @transform_6, window_bounds = array<i64: 1, 128>}, {pipeline_mode = #tpu.pipeline_mode<synchronous>, transform_indices = @transform_7, window_bounds = array<i64: 128, 128>}, {pipeline_mode = #tpu.pipeline_mode<synchronous>, transform_indices = @transform_8, window_bounds = array<i64: 1, 128>}, {transform_indices = @transform_9, window_bounds = array<i64: 8, 128>}]} {
    %c0 = arith.constant 0 : index
    %c0_0 = arith.constant 0 : index
    %0 = vector.load %arg1[%c0, %c0_0] : memref<8x128xf32, #tpu.memory_space<vmem>>, vector<8x128xf32>
    %c0_1 = arith.constant 0 : index
    %c0_2 = arith.constant 0 : index
    %1 = vector.load %arg2[%c0_1, %c0_2] : memref<128x128xf32, #tpu.memory_space<vmem>>, vector<128x128xf32>
    %c0_3 = arith.constant 0 : index
    %c0_4 = arith.constant 0 : index
    %2 = vector.load %arg3[%c0_3, %c0_4] : memref<1x128xf32, #tpu.memory_space<vmem>>, vector<1x128xf32>
    %cst = arith.constant dense<0.000000e+00> : vector<8x128xf32>
    %3 = tpu.matmul %0, %1, %cst {dimension_numbers = #tpu.dot_dimension_numbers<[1], [0], [0], [1], [0, 0, 1, 1], [], []>} : vector<8x128xf32>, vector<128x128xf32>, vector<8x128xf32> -> vector<8x128xf32>
    %4 = vector.broadcast %2 : vector<1x128xf32> to vector<8x128xf32>
    %5 = arith.addf %3, %4 : vector<8x128xf32>
    %cst_5 = arith.constant 0.000000e+00 : f32
    %6 = vector.broadcast %cst_5 : f32 to vector<8x128xf32>
    %7 = arith.maximumf %5, %6 : vector<8x128xf32>
    %c0_6 = arith.constant 0 : index
    %c0_7 = arith.constant 0 : index
    %8 = vector.load %arg4[%c0_6, %c0_7] : memref<128x128xf32, #tpu.memory_space<vmem>>, vector<128x128xf32>
    %c0_8 = arith.constant 0 : index
    %c0_9 = arith.constant 0 : index
    %9 = vector.load %arg5[%c0_8, %c0_9] : memref<1x128xf32, #tpu.memory_space<vmem>>, vector<1x128xf32>
    %cst_10 = arith.constant dense<0.000000e+00> : vector<8x128xf32>
    %10 = tpu.matmul %7, %8, %cst_10 {dimension_numbers = #tpu.dot_dimension_numbers<[1], [0], [0], [1], [0, 0, 1, 1], [], []>} : vector<8x128xf32>, vector<128x128xf32>, vector<8x128xf32> -> vector<8x128xf32>
    %11 = vector.broadcast %9 : vector<1x128xf32> to vector<8x128xf32>
    %12 = arith.addf %10, %11 : vector<8x128xf32>
    %cst_11 = arith.constant 0.000000e+00 : f32
    %13 = vector.broadcast %cst_11 : f32 to vector<8x128xf32>
    %14 = arith.maximumf %12, %13 : vector<8x128xf32>
    %c0_12 = arith.constant 0 : index
    %c0_13 = arith.constant 0 : index
    %15 = vector.load %arg6[%c0_12, %c0_13] : memref<128x128xf32, #tpu.memory_space<vmem>>, vector<128x128xf32>
    %c0_14 = arith.constant 0 : index
    %c0_15 = arith.constant 0 : index
    %16 = vector.load %arg7[%c0_14, %c0_15] : memref<1x128xf32, #tpu.memory_space<vmem>>, vector<1x128xf32>
    %cst_16 = arith.constant dense<0.000000e+00> : vector<8x128xf32>
    %17 = tpu.matmul %14, %15, %cst_16 {dimension_numbers = #tpu.dot_dimension_numbers<[1], [0], [0], [1], [0, 0, 1, 1], [], []>} : vector<8x128xf32>, vector<128x128xf32>, vector<8x128xf32> -> vector<8x128xf32>
    %18 = vector.broadcast %16 : vector<1x128xf32> to vector<8x128xf32>
    %19 = arith.addf %17, %18 : vector<8x128xf32>
    %cst_17 = arith.constant 0.000000e+00 : f32
    %20 = vector.broadcast %cst_17 : f32 to vector<8x128xf32>
    %21 = arith.maximumf %19, %20 : vector<8x128xf32>
    %c0_18 = arith.constant 0 : index
    %c0_19 = arith.constant 0 : index
    %22 = vector.load %arg8[%c0_18, %c0_19] : memref<128x128xf32, #tpu.memory_space<vmem>>, vector<128x128xf32>
    %c0_20 = arith.constant 0 : index
    %c0_21 = arith.constant 0 : index
    %23 = vector.load %arg9[%c0_20, %c0_21] : memref<1x128xf32, #tpu.memory_space<vmem>>, vector<1x128xf32>
    %cst_22 = arith.constant dense<0.000000e+00> : vector<8x128xf32>
    %24 = tpu.matmul %21, %22, %cst_22 {dimension_numbers = #tpu.dot_dimension_numbers<[1], [0], [0], [1], [0, 0, 1, 1], [], []>} : vector<8x128xf32>, vector<128x128xf32>, vector<8x128xf32> -> vector<8x128xf32>
    %25 = vector.broadcast %23 : vector<1x128xf32> to vector<8x128xf32>
    %26 = arith.addf %24, %25 : vector<8x128xf32>
    %c0_23 = arith.constant 0 : index
    %c0_24 = arith.constant 0 : index
    %27 = vector.load %arg10[%c0_23, %c0_24] : memref<8x128xf32, #tpu.memory_space<vmem>>, vector<8x128xf32>
    tpu.vector_store %arg10[%c0_23, %c0_24], %26 {strides = array<i32>} : memref<8x128xf32, #tpu.memory_space<vmem>>, vector<8x128xf32>,
    return
  }
  func.func @transform_0(%arg0: i32) -> (i32, i32) {
    %c0_i32 = arith.constant 0 : i32
    %c0_i32_0 = arith.constant 0 : i32
    return %arg0, %c0_i32 : i32, i32
  }
  func.func @transform_1(%arg0: i32) -> (i32, i32) {
    %c0_i32 = arith.constant 0 : i32
    %c0_i32_0 = arith.constant 0 : i32
    %c0_i32_1 = arith.constant 0 : i32
    return %c0_i32, %c0_i32_0 : i32, i32
  }
  func.func @transform_2(%arg0: i32) -> (i32, i32) {
    %c0_i32 = arith.constant 0 : i32
    %c0_i32_0 = arith.constant 0 : i32
    %c0_i32_1 = arith.constant 0 : i32
    return %c0_i32, %c0_i32_0 : i32, i32
  }
  func.func @transform_3(%arg0: i32) -> (i32, i32) {
    %c0_i32 = arith.constant 0 : i32
    %c0_i32_0 = arith.constant 0 : i32
    %c0_i32_1 = arith.constant 0 : i32
    return %c0_i32, %c0_i32_0 : i32, i32
  }
  func.func @transform_4(%arg0: i32) -> (i32, i32) {
    %c0_i32 = arith.constant 0 : i32
    %c0_i32_0 = arith.constant 0 : i32
    %c0_i32_1 = arith.constant 0 : i32
    return %c0_i32, %c0_i32_0 : i32, i32
  }
  func.func @transform_5(%arg0: i32) -> (i32, i32) {
    %c0_i32 = arith.constant 0 : i32
    %c0_i32_0 = arith.constant 0 : i32
    %c0_i32_1 = arith.constant 0 : i32
    return %c0_i32, %c0_i32_0 : i32, i32
  }
  func.func @transform_6(%arg0: i32) -> (i32, i32) {
    %c0_i32 = arith.constant 0 : i32
    %c0_i32_0 = arith.constant 0 : i32
    %c0_i32_1 = arith.constant 0 : i32
    return %c0_i32, %c0_i32_0 : i32, i32
  }
  func.func @transform_7(%arg0: i32) -> (i32, i32) {
    %c0_i32 = arith.constant 0 : i32
    %c0_i32_0 = arith.constant 0 : i32
    %c0_i32_1 = arith.constant 0 : i32
    return %c0_i32, %c0_i32_0 : i32, i32
  }
  func.func @transform_8(%arg0: i32) -> (i32, i32) {
    %c0_i32 = arith.constant 0 : i32
    %c0_i32_0 = arith.constant 0 : i32
    %c0_i32_1 = arith.constant 0 : i32
    return %c0_i32, %c0_i32_0 : i32, i32
  }
  func.func @transform_9(%arg0: i32) -> (i32, i32) {
    %c0_i32 = arith.constant 0 : i32
    %c0_i32_0 = arith.constant 0 : i32
    return %arg0, %c0_i32 : i32, i32
  }
}

module attributes {stable_mosaic.version = 11 : i64} {
  func.func @_linear_kernel(%arg0: i32, %arg1: i32, %arg2: memref<8x128xf32, #tpu.memory_space<vmem>>, %arg3: memref<128x128xf32, #tpu.memory_space<vmem>>, %arg4: memref<1x128xf32, #tpu.memory_space<vmem>>, %arg5: memref<8x128xf32, #tpu.memory_space<vmem>>, %arg6: memref<8x128xf32, #tpu.memory_space<vmem>>) attributes {dimension_semantics = [#tpu.dimension_semantics<parallel>, #tpu.dimension_semantics<arbitrary>], iteration_bounds = array<i64: 1, 1>, scalar_prefetch = 0 : i64, scratch_operands = 1 : i64, tpu.core_type = #tpu.core_type<tc>, window_params = [{transform_indices = @transform_0, window_bounds = array<i64: 8, 128>}, {transform_indices = @transform_1, window_bounds = array<i64: 128, 128>}, {pipeline_mode = #tpu.pipeline_mode<synchronous>, transform_indices = @transform_2, window_bounds = array<i64: 1, 128>}, {transform_indices = @transform_3, window_bounds = array<i64: 8, 128>}]} {
    %c0_i32 = arith.constant 0 : i32
    %0 = arith.cmpi eq, %arg1, %c0_i32 : i32
    %1 = arith.extui %0 : i1 to i32
    %c0_i32_0 = arith.constant 0 : i32
    %2 = arith.cmpi ne, %1, %c0_i32_0 : i32
    scf.if %2 {
      %cst_10 = arith.constant 0.000000e+00 : f32
      %12 = vector.broadcast %cst_10 : f32 to vector<8x128xf32>
      %c0_11 = arith.constant 0 : index
      %c0_12 = arith.constant 0 : index
      %13 = vector.load %arg6[%c0_11, %c0_12] : memref<8x128xf32, #tpu.memory_space<vmem>>, vector<8x128xf32>
      tpu.vector_store %arg6[%c0_11, %c0_12], %12 {strides = array<i32>} : memref<8x128xf32, #tpu.memory_space<vmem>>, vector<8x128xf32>,
    } else {
    }
    %c0 = arith.constant 0 : index
    %c0_1 = arith.constant 0 : index
    %3 = vector.load %arg6[%c0, %c0_1] : memref<8x128xf32, #tpu.memory_space<vmem>>, vector<8x128xf32>
    %c0_2 = arith.constant 0 : index
    %c0_3 = arith.constant 0 : index
    %4 = vector.load %arg2[%c0_2, %c0_3] : memref<8x128xf32, #tpu.memory_space<vmem>>, vector<8x128xf32>
    %c0_4 = arith.constant 0 : index
    %c0_5 = arith.constant 0 : index
    %5 = vector.load %arg3[%c0_4, %c0_5] : memref<128x128xf32, #tpu.memory_space<vmem>>, vector<128x128xf32>
    %cst = arith.constant dense<0.000000e+00> : vector<8x128xf32>
    %6 = tpu.matmul %4, %5, %cst {dimension_numbers = #tpu.dot_dimension_numbers<[1], [0], [0], [1], [0, 0, 1, 1], [], []>} : vector<8x128xf32>, vector<128x128xf32>, vector<8x128xf32> -> vector<8x128xf32>
    %7 = arith.addf %3, %6 : vector<8x128xf32>
    %c0_6 = arith.constant 0 : index
    %c0_7 = arith.constant 0 : index
    %8 = vector.load %arg6[%c0_6, %c0_7] : memref<8x128xf32, #tpu.memory_space<vmem>>, vector<8x128xf32>
    tpu.vector_store %arg6[%c0_6, %c0_7], %7 {strides = array<i32>} : memref<8x128xf32, #tpu.memory_space<vmem>>, vector<8x128xf32>,
    %c0_i32_8 = arith.constant 0 : i32
    %9 = arith.cmpi eq, %arg1, %c0_i32_8 : i32
    %10 = arith.extui %9 : i1 to i32
    %c0_i32_9 = arith.constant 0 : i32
    %11 = arith.cmpi ne, %10, %c0_i32_9 : i32
    scf.if %11 {
      %c0_10 = arith.constant 0 : index
      %c0_11 = arith.constant 0 : index
      %12 = vector.load %arg6[%c0_10, %c0_11] : memref<8x128xf32, #tpu.memory_space<vmem>>, vector<8x128xf32>
      %c0_12 = arith.constant 0 : index
      %c0_13 = arith.constant 0 : index
      %13 = vector.load %arg4[%c0_12, %c0_13] : memref<1x128xf32, #tpu.memory_space<vmem>>, vector<1x128xf32>
      %14 = vector.broadcast %13 : vector<1x128xf32> to vector<8x128xf32>
      %15 = arith.addf %12, %14 : vector<8x128xf32>
      %cst_14 = arith.constant 0.000000e+00 : f32
      %16 = vector.broadcast %cst_14 : f32 to vector<8x128xf32>
      %17 = arith.maximumf %15, %16 : vector<8x128xf32>
      %c0_15 = arith.constant 0 : index
      %c0_16 = arith.constant 0 : index
      %18 = vector.load %arg5[%c0_15, %c0_16] : memref<8x128xf32, #tpu.memory_space<vmem>>, vector<8x128xf32>
      tpu.vector_store %arg5[%c0_15, %c0_16], %17 {strides = array<i32>} : memref<8x128xf32, #tpu.memory_space<vmem>>, vector<8x128xf32>,
    } else {
    }
    return
  }
  func.func @transform_0(%arg0: i32, %arg1: i32) -> (i32, i32) {
    %c0_i32 = arith.constant 0 : i32
    return %arg0, %arg1 : i32, i32
  }
  func.func @transform_1(%arg0: i32, %arg1: i32) -> (i32, i32) {
    %c0_i32 = arith.constant 0 : i32
    %c0_i32_0 = arith.constant 0 : i32
    return %arg1, %c0_i32 : i32, i32
  }
  func.func @transform_2(%arg0: i32, %arg1: i32) -> (i32, i32) {
    %c0_i32 = arith.constant 0 : i32
    %c0_i32_0 = arith.constant 0 : i32
    %c0_i32_1 = arith.constant 0 : i32
    return %c0_i32, %c0_i32_0 : i32, i32
  }
  func.func @transform_3(%arg0: i32, %arg1: i32) -> (i32, i32) {
    %c0_i32 = arith.constant 0 : i32
    %c0_i32_0 = arith.constant 0 : i32
    return %arg0, %c0_i32 : i32, i32
  }
}

module attributes {stable_mosaic.version = 11 : i64} {
  func.func @_linear_kernel(%arg0: i32, %arg1: i32, %arg2: memref<8x128xf32, #tpu.memory_space<vmem>>, %arg3: memref<128x128xf32, #tpu.memory_space<vmem>>, %arg4: memref<1x128xf32, #tpu.memory_space<vmem>>, %arg5: memref<8x128xf32, #tpu.memory_space<vmem>>, %arg6: memref<8x128xf32, #tpu.memory_space<vmem>>) attributes {dimension_semantics = [#tpu.dimension_semantics<parallel>, #tpu.dimension_semantics<arbitrary>], iteration_bounds = array<i64: 1, 1>, scalar_prefetch = 0 : i64, scratch_operands = 1 : i64, tpu.core_type = #tpu.core_type<tc>, window_params = [{transform_indices = @transform_0, window_bounds = array<i64: 8, 128>}, {transform_indices = @transform_1, window_bounds = array<i64: 128, 128>}, {pipeline_mode = #tpu.pipeline_mode<synchronous>, transform_indices = @transform_2, window_bounds = array<i64: 1, 128>}, {transform_indices = @transform_3, window_bounds = array<i64: 8, 128>}]} {
    %c0_i32 = arith.constant 0 : i32
    %0 = arith.cmpi eq, %arg1, %c0_i32 : i32
    %1 = arith.extui %0 : i1 to i32
    %c0_i32_0 = arith.constant 0 : i32
    %2 = arith.cmpi ne, %1, %c0_i32_0 : i32
    scf.if %2 {
      %cst_10 = arith.constant 0.000000e+00 : f32
      %12 = vector.broadcast %cst_10 : f32 to vector<8x128xf32>
      %c0_11 = arith.constant 0 : index
      %c0_12 = arith.constant 0 : index
      %13 = vector.load %arg6[%c0_11, %c0_12] : memref<8x128xf32, #tpu.memory_space<vmem>>, vector<8x128xf32>
      tpu.vector_store %arg6[%c0_11, %c0_12], %12 {strides = array<i32>} : memref<8x128xf32, #tpu.memory_space<vmem>>, vector<8x128xf32>,
    } else {
    }
    %c0 = arith.constant 0 : index
    %c0_1 = arith.constant 0 : index
    %3 = vector.load %arg6[%c0, %c0_1] : memref<8x128xf32, #tpu.memory_space<vmem>>, vector<8x128xf32>
    %c0_2 = arith.constant 0 : index
    %c0_3 = arith.constant 0 : index
    %4 = vector.load %arg2[%c0_2, %c0_3] : memref<8x128xf32, #tpu.memory_space<vmem>>, vector<8x128xf32>
    %c0_4 = arith.constant 0 : index
    %c0_5 = arith.constant 0 : index
    %5 = vector.load %arg3[%c0_4, %c0_5] : memref<128x128xf32, #tpu.memory_space<vmem>>, vector<128x128xf32>
    %cst = arith.constant dense<0.000000e+00> : vector<8x128xf32>
    %6 = tpu.matmul %4, %5, %cst {dimension_numbers = #tpu.dot_dimension_numbers<[1], [0], [0], [1], [0, 0, 1, 1], [], []>} : vector<8x128xf32>, vector<128x128xf32>, vector<8x128xf32> -> vector<8x128xf32>
    %7 = arith.addf %3, %6 : vector<8x128xf32>
    %c0_6 = arith.constant 0 : index
    %c0_7 = arith.constant 0 : index
    %8 = vector.load %arg6[%c0_6, %c0_7] : memref<8x128xf32, #tpu.memory_space<vmem>>, vector<8x128xf32>
    tpu.vector_store %arg6[%c0_6, %c0_7], %7 {strides = array<i32>} : memref<8x128xf32, #tpu.memory_space<vmem>>, vector<8x128xf32>,
    %c0_i32_8 = arith.constant 0 : i32
    %9 = arith.cmpi eq, %arg1, %c0_i32_8 : i32
    %10 = arith.extui %9 : i1 to i32
    %c0_i32_9 = arith.constant 0 : i32
    %11 = arith.cmpi ne, %10, %c0_i32_9 : i32
    scf.if %11 {
      %c0_10 = arith.constant 0 : index
      %c0_11 = arith.constant 0 : index
      %12 = vector.load %arg6[%c0_10, %c0_11] : memref<8x128xf32, #tpu.memory_space<vmem>>, vector<8x128xf32>
      %c0_12 = arith.constant 0 : index
      %c0_13 = arith.constant 0 : index
      %13 = vector.load %arg4[%c0_12, %c0_13] : memref<1x128xf32, #tpu.memory_space<vmem>>, vector<1x128xf32>
      %14 = vector.broadcast %13 : vector<1x128xf32> to vector<8x128xf32>
      %15 = arith.addf %12, %14 : vector<8x128xf32>
      %c0_14 = arith.constant 0 : index
      %c0_15 = arith.constant 0 : index
      %16 = vector.load %arg5[%c0_14, %c0_15] : memref<8x128xf32, #tpu.memory_space<vmem>>, vector<8x128xf32>
      tpu.vector_store %arg5[%c0_14, %c0_15], %15 {strides = array<i32>} : memref<8x128xf32, #tpu.memory_space<vmem>>, vector<8x128xf32>,
    } else {
    }
    return
  }
  func.func @transform_0(%arg0: i32, %arg1: i32) -> (i32, i32) {
    %c0_i32 = arith.constant 0 : i32
    return %arg0, %arg1 : i32, i32
  }
  func.func @transform_1(%arg0: i32, %arg1: i32) -> (i32, i32) {
    %c0_i32 = arith.constant 0 : i32
    %c0_i32_0 = arith.constant 0 : i32
    return %arg1, %c0_i32 : i32, i32
  }
  func.func @transform_2(%arg0: i32, %arg1: i32) -> (i32, i32) {
    %c0_i32 = arith.constant 0 : i32
    %c0_i32_0 = arith.constant 0 : i32
    %c0_i32_1 = arith.constant 0 : i32
    return %c0_i32, %c0_i32_0 : i32, i32
  }
  func.func @transform_3(%arg0: i32, %arg1: i32) -> (i32, i32) {
    %c0_i32 = arith.constant 0 : i32
    %c0_i32_0 = arith.constant 0 : i32
    return %arg0, %c0_i32 : i32, i32
  }
}

module attributes {stable_mosaic.version = 11 : i64} {
  func.func @_linear_kernel(%arg0: i32, %arg1: i32, %arg2: memref<8x128xf32, #tpu.memory_space<vmem>>, %arg3: memref<128x128xf32, #tpu.memory_space<vmem>>, %arg4: memref<1x128xf32, #tpu.memory_space<vmem>>, %arg5: memref<8x128xf32, #tpu.memory_space<vmem>>, %arg6: memref<8x128xf32, #tpu.memory_space<vmem>>) attributes {dimension_semantics = [#tpu.dimension_semantics<parallel>, #tpu.dimension_semantics<arbitrary>], iteration_bounds = array<i64: 1, 1>, scalar_prefetch = 0 : i64, scratch_operands = 1 : i64, tpu.core_type = #tpu.core_type<tc>, window_params = [{transform_indices = @transform_0, window_bounds = array<i64: 8, 128>}, {transform_indices = @transform_1, window_bounds = array<i64: 128, 128>}, {pipeline_mode = #tpu.pipeline_mode<synchronous>, transform_indices = @transform_2, window_bounds = array<i64: 1, 128>}, {transform_indices = @transform_3, window_bounds = array<i64: 8, 128>}]} {
    %c0_i32 = arith.constant 0 : i32
    %0 = arith.cmpi eq, %arg1, %c0_i32 : i32
    %1 = arith.extui %0 : i1 to i32
    %c0_i32_0 = arith.constant 0 : i32
    %2 = arith.cmpi ne, %1, %c0_i32_0 : i32
    scf.if %2 {
      %cst_10 = arith.constant 0.000000e+00 : f32
      %12 = vector.broadcast %cst_10 : f32 to vector<8x128xf32>
      %c0_11 = arith.constant 0 : index
      %c0_12 = arith.constant 0 : index
      %13 = vector.load %arg6[%c0_11, %c0_12] : memref<8x128xf32, #tpu.memory_space<vmem>>, vector<8x128xf32>
      tpu.vector_store %arg6[%c0_11, %c0_12], %12 {strides = array<i32>} : memref<8x128xf32, #tpu.memory_space<vmem>>, vector<8x128xf32>,
    } else {
    }
    %c0 = arith.constant 0 : index
    %c0_1 = arith.constant 0 : index
    %3 = vector.load %arg6[%c0, %c0_1] : memref<8x128xf32, #tpu.memory_space<vmem>>, vector<8x128xf32>
    %c0_2 = arith.constant 0 : index
    %c0_3 = arith.constant 0 : index
    %4 = vector.load %arg2[%c0_2, %c0_3] : memref<8x128xf32, #tpu.memory_space<vmem>>, vector<8x128xf32>
    %c0_4 = arith.constant 0 : index
    %c0_5 = arith.constant 0 : index
    %5 = vector.load %arg3[%c0_4, %c0_5] : memref<128x128xf32, #tpu.memory_space<vmem>>, vector<128x128xf32>
    %cst = arith.constant dense<0.000000e+00> : vector<8x128xf32>
    %6 = tpu.matmul %4, %5, %cst {dimension_numbers = #tpu.dot_dimension_numbers<[1], [0], [0], [1], [0, 0, 1, 1], [], []>} : vector<8x128xf32>, vector<128x128xf32>, vector<8x128xf32> -> vector<8x128xf32>
    %7 = arith.addf %3, %6 : vector<8x128xf32>
    %c0_6 = arith.constant 0 : index
    %c0_7 = arith.constant 0 : index
    %8 = vector.load %arg6[%c0_6, %c0_7] : memref<8x128xf32, #tpu.memory_space<vmem>>, vector<8x128xf32>
    tpu.vector_store %arg6[%c0_6, %c0_7], %7 {strides = array<i32>} : memref<8x128xf32, #tpu.memory_space<vmem>>, vector<8x128xf32>,
    %c0_i32_8 = arith.constant 0 : i32
    %9 = arith.cmpi eq, %arg1, %c0_i32_8 : i32
    %10 = arith.extui %9 : i1 to i32
    %c0_i32_9 = arith.constant 0 : i32
    %11 = arith.cmpi ne, %10, %c0_i32_9 : i32
    scf.if %11 {
      %c0_10 = arith.constant 0 : index
      %c0_11 = arith.constant 0 : index
      %12 = vector.load %arg6[%c0_10, %c0_11] : memref<8x128xf32, #tpu.memory_space<vmem>>, vector<8x128xf32>
      %c0_12 = arith.constant 0 : index
      %c0_13 = arith.constant 0 : index
      %13 = vector.load %arg4[%c0_12, %c0_13] : memref<1x128xf32, #tpu.memory_space<vmem>>, vector<1x128xf32>
      %14 = vector.broadcast %13 : vector<1x128xf32> to vector<8x128xf32>
      %15 = arith.addf %12, %14 : vector<8x128xf32>
      %cst_14 = arith.constant 0.000000e+00 : f32
      %16 = vector.broadcast %cst_14 : f32 to vector<8x128xf32>
      %17 = arith.maximumf %15, %16 : vector<8x128xf32>
      %c0_15 = arith.constant 0 : index
      %c0_16 = arith.constant 0 : index
      %18 = vector.load %arg5[%c0_15, %c0_16] : memref<8x128xf32, #tpu.memory_space<vmem>>, vector<8x128xf32>
      tpu.vector_store %arg5[%c0_15, %c0_16], %17 {strides = array<i32>} : memref<8x128xf32, #tpu.memory_space<vmem>>, vector<8x128xf32>,
    } else {
    }
    return
  }
  func.func @transform_0(%arg0: i32, %arg1: i32) -> (i32, i32) {
    %c0_i32 = arith.constant 0 : i32
    return %arg0, %arg1 : i32, i32
  }
  func.func @transform_1(%arg0: i32, %arg1: i32) -> (i32, i32) {
    %c0_i32 = arith.constant 0 : i32
    %c0_i32_0 = arith.constant 0 : i32
    return %arg1, %c0_i32 : i32, i32
  }
  func.func @transform_2(%arg0: i32, %arg1: i32) -> (i32, i32) {
    %c0_i32 = arith.constant 0 : i32
    %c0_i32_0 = arith.constant 0 : i32
    %c0_i32_1 = arith.constant 0 : i32
    return %c0_i32, %c0_i32_0 : i32, i32
  }
  func.func @transform_3(%arg0: i32, %arg1: i32) -> (i32, i32) {
    %c0_i32 = arith.constant 0 : i32
    %c0_i32_0 = arith.constant 0 : i32
    return %arg0, %c0_i32 : i32, i32
  }
}

</mosaic_0001>

<llo_original>
// kernel: _mlp_fused.1
$region0: #{_mlp_fused.1}
  #allocation0 [shape = 'u32[]', space=smem, size = 0x4, offset = 0x4, fixed_abs, tag = 'smem constant byte address 0x4 - core index']
  #allocation1 [shape = 'u32[144,128]{1,0:T(1,128)}', space=vmem, size = 0x12000, scoped, tag = 'internal scratch']
  %s0 = inlined_call_operand.vmem [shape: f32[8,128], index: 0, kind: input, shape index: {}]
  %s1 = inlined_call_operand.hbm [shape: f32[128,128], index: 1, kind: input, shape index: {}]
  %s2 = inlined_call_operand.vmem [shape: f32[1,128], index: 2, kind: input, shape index: {}]
  %s3 = inlined_call_operand.hbm [shape: f32[128,128], index: 3, kind: input, shape index: {}]
  %s4 = inlined_call_operand.vmem [shape: f32[1,128], index: 4, kind: input, shape index: {}]
  %s5 = inlined_call_operand.hbm [shape: f32[128,128], index: 5, kind: input, shape index: {}]
  %s6 = inlined_call_operand.vmem [shape: f32[1,128], index: 6, kind: input, shape index: {}]
  %s7 = inlined_call_operand.hbm [shape: f32[128,128], index: 7, kind: input, shape index: {}]
  %s8 = inlined_call_operand.vmem [shape: f32[1,128], index: 8, kind: input, shape index: {}]
  %s9 = inlined_call_operand.hbm [shape: f32[8,128], index: 9, kind: output, shape index: {}]
  %s10 = sld [smem:[#allocation0]]
  $region62: #{_mlp_fused.1} parent=0
    _
  %s12 = ssub.s32 1, %s10
  %s13 = scalar_select 0, %s12, %s10
  $region1: #{_mlp_fused.1} parent=0
    #allocation2 [shape = 'u8[65536]{0}', space=vmem, size = 0x10000, scoped, tag = 'input window, operand 1, single buffered']
    #allocation3 [shape = 's32[1]{0}', space=sflag, size = 0x4, scoped, tag = 'scoped memory for _mlp_fused.1']
    #allocation4 [shape = 's32[1]{0}', space=sflag, size = 0x4, scoped, tag = 'scoped memory for _mlp_fused.1']
    #allocation5 [shape = 'u8[65536]{0}', space=vmem, size = 0x10000, scoped, tag = 'input window, operand 3, single buffered']
    #allocation6 [shape = 's32[1]{0}', space=sflag, size = 0x4, scoped, tag = 'scoped memory for _mlp_fused.1']
    #allocation7 [shape = 'u8[65536]{0}', space=vmem, size = 0x10000, scoped, tag = 'input window, operand 5, single buffered']
    #allocation8 [shape = 'u8[65536]{0}', space=vmem, size = 0x10000, scoped, tag = 'input window, operand 7, single buffered']
    #allocation9 [shape = 's32[1]{0}', space=sflag, size = 0x4, scoped, tag = 'scoped memory for _mlp_fused.1']
    #allocation10 [shape = 'u8[4096]{0}', space=vmem, size = 0x1000, scoped, tag = 'output window, operand 0, single buffered']
    %14 = vsyncpa [#allocation3], 0
    %15 = vsyncpa [#allocation6], 0
    %16 = vsyncpa [#allocation9], 0
    %17 = vsyncpa [#allocation4], 0
    // Predicated region
    $region2: #{_mlp_fused.1} parent=1 // pred_check
      _
    $region3: #{_mlp_fused.1} parent=1 // pred_check_branch
      %19 = sbr.rel (0) target = $region5
    $region4: #{_mlp_fused.1} parent=1 // pred_region
      _
    $region5: #{_mlp_fused.1} parent=1 // pred_fallthru
      _
    // Predicated region
    $region6: #{_mlp_fused.1} parent=1 // pred_check
      _
    $region7: #{_mlp_fused.1} parent=1 // pred_check_branch
      %21 = sbr.rel (0) target = $region9
    $region8: #{_mlp_fused.1} parent=1 // pred_region
      %s23 = ssub.s32 2048, 2048
      %24 = vsyncadd [#allocation3], %s23
      %s25 = sshll.u32 [#allocation2], 4
      %s26 = int_to_ptr.vmem [resolvable:$true] %s25
      %31 = dma.hbm_to_vmem [thread:$0]  %s1, 2048, %s26, [#allocation3], 128, 128, 8
    $region9: #{_mlp_fused.1} parent=1 // pred_fallthru
      _
    // Predicated region
    $region10: #{_mlp_fused.1} parent=1 // pred_check
      _
    $region11: #{_mlp_fused.1} parent=1 // pred_check_branch
      %33 = sbr.rel (0) target = $region13
    $region12: #{_mlp_fused.1} parent=1 // pred_region
      _
    $region13: #{_mlp_fused.1} parent=1 // pred_fallthru
      _
    // Predicated region
    $region14: #{_mlp_fused.1} parent=1 // pred_check
      _
    $region15: #{_mlp_fused.1} parent=1 // pred_check_branch
      %35 = sbr.rel (0) target = $region17
    $region16: #{_mlp_fused.1} parent=1 // pred_region
      %s37 = ssub.s32 2048, 2048
      %38 = vsyncadd [#allocation6], %s37
      %s39 = sshll.u32 [#allocation5], 4
      %s40 = int_to_ptr.vmem [resolvable:$true] %s39
      %45 = dma.hbm_to_vmem [thread:$0]  %s3, 2048, %s40, [#allocation6], 128, 128, 8
    $region17: #{_mlp_fused.1} parent=1 // pred_fallthru
      _
    // Predicated region
    $region18: #{_mlp_fused.1} parent=1 // pred_check
      _
    $region19: #{_mlp_fused.1} parent=1 // pred_check_branch
      %47 = sbr.rel (0) target = $region21
    $region20: #{_mlp_fused.1} parent=1 // pred_region
      _
    $region21: #{_mlp_fused.1} parent=1 // pred_fallthru
      _
    // Predicated region
    $region22: #{_mlp_fused.1} parent=1 // pred_check
      _
    $region23: #{_mlp_fused.1} parent=1 // pred_check_branch
      %49 = sbr.rel (0) target = $region25
    $region24: #{_mlp_fused.1} parent=1 // pred_region
      %s51 = ssub.s32 2048, 2048
      %52 = vsyncadd [#allocation6], %s51
      %s53 = sshll.u32 [#allocation7], 4
      %s54 = int_to_ptr.vmem [resolvable:$true] %s53
      %59 = dma.hbm_to_vmem [thread:$0]  %s5, 2048, %s54, [#allocation6], 128, 128, 8
    $region25: #{_mlp_fused.1} parent=1 // pred_fallthru
      _
    // Predicated region
    $region26: #{_mlp_fused.1} parent=1 // pred_check
      _
    $region27: #{_mlp_fused.1} parent=1 // pred_check_branch
      %61 = sbr.rel (0) target = $region29
    $region28: #{_mlp_fused.1} parent=1 // pred_region
      _
    $region29: #{_mlp_fused.1} parent=1 // pred_fallthru
      _
    // Predicated region
    $region30: #{_mlp_fused.1} parent=1 // pred_check
      _
    $region31: #{_mlp_fused.1} parent=1 // pred_check_branch
      %63 = sbr.rel (0) target = $region33
    $region32: #{_mlp_fused.1} parent=1 // pred_region
      %s65 = ssub.s32 2048, 2048
      %66 = vsyncadd [#allocation9], %s65
      %s67 = sshll.u32 [#allocation8], 4
      %s68 = int_to_ptr.vmem [resolvable:$true] %s67
      %73 = dma.hbm_to_vmem [thread:$0]  %s7, 2048, %s68, [#allocation9], 128, 128, 8
    $region33: #{_mlp_fused.1} parent=1 // pred_fallthru
      _
    // Predicated region
    $region34: #{_mlp_fused.1} parent=1 // pred_check
      _
    $region35: #{_mlp_fused.1} parent=1 // pred_check_branch
      %75 = sbr.rel (0) target = $region37
    $region36: #{_mlp_fused.1} parent=1 // pred_region
      _
    $region37: #{_mlp_fused.1} parent=1 // pred_fallthru
      _
    // Predicated region
    $region38: #{_mlp_fused.1} parent=1 // pred_check
      _
    $region39: #{_mlp_fused.1} parent=1 // pred_check_branch
      %77 = sbr.rel (0) target = $region41
    $region40: #{_mlp_fused.1} parent=1 // pred_region
      %78 = dma.done [#allocation3], 2048
    $region41: #{_mlp_fused.1} parent=1 // pred_fallthru
      _
    // Predicated region
    $region42: #{_mlp_fused.1} parent=1 // pred_check
      _
    $region43: #{_mlp_fused.1} parent=1 // pred_check_branch
      %80 = sbr.rel (0) target = $region45
    $region44: #{_mlp_fused.1} parent=1 // pred_region
      %81 = dma.done [#allocation6], 2048
    $region45: #{_mlp_fused.1} parent=1 // pred_fallthru
      _
    // Predicated region
    $region46: #{_mlp_fused.1} parent=1 // pred_check
      _
    $region47: #{_mlp_fused.1} parent=1 // pred_check_branch
      %83 = sbr.rel (0) target = $region49
    $region48: #{_mlp_fused.1} parent=1 // pred_region
      %84 = dma.done [#allocation6], 2048
    $region49: #{_mlp_fused.1} parent=1 // pred_fallthru
      _
    // Predicated region
    $region50: #{_mlp_fused.1} parent=1 // pred_check
      _
    $region51: #{_mlp_fused.1} parent=1 // pred_check_branch
      %86 = sbr.rel (0) target = $region53
    $region52: #{_mlp_fused.1} parent=1 // pred_region
      %87 = dma.done [#allocation9], 2048
    $region53: #{_mlp_fused.1} parent=1 // pred_fallthru
      _
    %v88 = vld [vmem:[%s0] sm:$0xff]
    %v89 = vld [vmem:[#allocation2] sm:$0xff]
    %v90 = vld [vmem:[#allocation2 + $0x8] sm:$0xff]
    %v91 = vld [vmem:[#allocation2 + $0x10] sm:$0xff]
    %v92 = vld [vmem:[#allocation2 + $0x18] sm:$0xff]
    %v93 = vld [vmem:[#allocation2 + $0x20] sm:$0xff]
    %v94 = vld [vmem:[#allocation2 + $0x28] sm:$0xff]
    %v95 = vld [vmem:[#allocation2 + $0x30] sm:$0xff]
    %v96 = vld [vmem:[#allocation2 + $0x38] sm:$0xff]
    %v97 = vld [vmem:[#allocation2 + $0x40] sm:$0xff]
    %v98 = vld [vmem:[#allocation2 + $0x48] sm:$0xff]
    %v99 = vld [vmem:[#allocation2 + $0x50] sm:$0xff]
    %v100 = vld [vmem:[#allocation2 + $0x58] sm:$0xff]
    %v101 = vld [vmem:[#allocation2 + $0x60] sm:$0xff]
    %v102 = vld [vmem:[#allocation2 + $0x68] sm:$0xff]
    %v103 = vld [vmem:[#allocation2 + $0x70] sm:$0xff]
    %v104 = vld [vmem:[#allocation2 + $0x78] sm:$0xff]
    %v105 = vld [vmem:[%s2] sm:$0x1]
    %v107 = vlaneseq
    %v108 = vshrl.u32 %v107, 7
    %v109 = vsub.s32 0, %v108
    %v110 = vrot.slane %v105, %v109
    %112 = vmatprep.subr.mxu0 0.0
    %113 = vmatpush1.msra.mxu0 %v89
    %114 = vmatprep.subr.mxu0 0.0
    %115 = vmatpush1.msra.mxu0 %v90
    %116 = vmatprep.subr.mxu0 0.0
    %117 = vmatpush1.msra.mxu0 %v91
    %118 = vmatprep.subr.mxu0 0.0
    %119 = vmatpush1.msra.mxu0 %v92
    %120 = vmatprep.subr.mxu0 0.0
    %121 = vmatpush1.msra.mxu0 %v93
    %122 = vmatprep.subr.mxu0 0.0
    %123 = vmatpush1.msra.mxu0 %v94
    %124 = vmatprep.subr.mxu0 0.0
    %125 = vmatpush1.msra.mxu0 %v95
    %126 = vmatprep.subr.mxu0 0.0
    %127 = vmatpush1.msra.mxu0 %v96
    %128 = vmatprep.subr.mxu0 0.0
    %129 = vmatpush1.msra.mxu0 %v97
    %130 = vmatprep.subr.mxu0 0.0
    %131 = vmatpush1.msra.mxu0 %v98
    %132 = vmatprep.subr.mxu0 0.0
    %133 = vmatpush1.msra.mxu0 %v99
    %134 = vmatprep.subr.mxu0 0.0
    %135 = vmatpush1.msra.mxu0 %v100
    %136 = vmatprep.subr.mxu0 0.0
    %137 = vmatpush1.msra.mxu0 %v101
    %138 = vmatprep.subr.mxu0 0.0
    %139 = vmatpush1.msra.mxu0 %v102
    %140 = vmatprep.subr.mxu0 0.0
    %141 = vmatpush1.msra.mxu0 %v103
    %142 = vmatprep.subr.mxu0 0.0
    %143 = vmatpush1.msra.mxu0 %v104
    %144 = vmatprep.subr.mxu0 0.0
    %145 = vmatpush1.msra.mxu0 0.0
    %146 = vmatprep.subr.mxu0 0.0
    %147 = vmatpush1.msra.mxu0 0.0
    %148 = vmatprep.subr.mxu0 0.0
    %149 = vmatpush1.msra.mxu0 0.0
    %150 = vmatprep.subr.mxu0 0.0
    %151 = vmatpush1.msra.mxu0 0.0
    %152 = vmatprep.subr.mxu0 0.0
    %153 = vmatpush1.msra.mxu0 0.0
    %154 = vmatprep.subr.mxu0 0.0
    %155 = vmatpush1.msra.mxu0 0.0
    %156 = vmatprep.subr.mxu0 0.0
    %157 = vmatpush1.msra.mxu0 0.0
    %158 = vmatprep.subr.mxu0 0.0
    %159 = vmatpush1.msra.mxu0 0.0
    %160 = vmatprep.subr.mxu0 0.0
    %161 = vmatpush1.msra.mxu0 0.0
    %162 = vmatprep.subr.mxu0 0.0
    %163 = vmatpush1.msra.mxu0 0.0
    %164 = vmatprep.subr.mxu0 0.0
    %165 = vmatpush1.msra.mxu0 0.0
    %166 = vmatprep.subr.mxu0 0.0
    %167 = vmatpush1.msra.mxu0 0.0
    %168 = vmatprep.subr.mxu0 0.0
    %169 = vmatpush1.msra.mxu0 0.0
    %170 = vmatprep.subr.mxu0 0.0
    %171 = vmatpush1.msra.mxu0 0.0
    %172 = vmatprep.subr.mxu0 0.0
    %173 = vmatpush1.msra.mxu0 0.0
    %174 = vmatprep.subr.mxu0 0.0
    %175 = vmatpush1.msra.mxu0 0.0
    %176 = vmatprep.mubr.f32.mxu0 0.0
    %177 = vmatmul.mubr.f32.gmra.mrb[0].mxu0 %v88
    %v178 = vpop.f32.mrb[0].mxu0
    %v179 = vadd.f32 %v110, %v178
    %v180 = vpop.f32.mrb[0].mxu0
    %181 = vdwg.mxu0
    %v182 = vmax.f32 %v179, 0.0
    %v183 = vld [vmem:[#allocation5] sm:$0xff]
    %v184 = vld [vmem:[#allocation5 + $0x8] sm:$0xff]
    %v185 = vld [vmem:[#allocation5 + $0x10] sm:$0xff]
    %v186 = vld [vmem:[#allocation5 + $0x18] sm:$0xff]
    %v187 = vld [vmem:[#allocation5 + $0x20] sm:$0xff]
    %v188 = vld [vmem:[#allocation5 + $0x28] sm:$0xff]
    %v189 = vld [vmem:[#allocation5 + $0x30] sm:$0xff]
    %v190 = vld [vmem:[#allocation5 + $0x38] sm:$0xff]
    %v191 = vld [vmem:[#allocation5 + $0x40] sm:$0xff]
    %v192 = vld [vmem:[#allocation5 + $0x48] sm:$0xff]
    %v193 = vld [vmem:[#allocation5 + $0x50] sm:$0xff]
    %v194 = vld [vmem:[#allocation5 + $0x58] sm:$0xff]
    %v195 = vld [vmem:[#allocation5 + $0x60] sm:$0xff]
    %v196 = vld [vmem:[#allocation5 + $0x68] sm:$0xff]
    %v197 = vld [vmem:[#allocation5 + $0x70] sm:$0xff]
    %v198 = vld [vmem:[#allocation5 + $0x78] sm:$0xff]
    %v199 = vld [vmem:[%s4] sm:$0x1]
    %v201 = vlaneseq
    %v202 = vshrl.u32 %v201, 7
    %v203 = vsub.s32 0, %v202
    %v204 = vrot.slane %v199, %v203
    %206 = vmatprep.subr.mxu0 0.0
    %207 = vmatpush1.msra.mxu0 %v183
    %208 = vmatprep.subr.mxu0 0.0
    %209 = vmatpush1.msra.mxu0 %v184
    %210 = vmatprep.subr.mxu0 0.0
    %211 = vmatpush1.msra.mxu0 %v185
    %212 = vmatprep.subr.mxu0 0.0
    %213 = vmatpush1.msra.mxu0 %v186
    %214 = vmatprep.subr.mxu0 0.0
    %215 = vmatpush1.msra.mxu0 %v187
    %216 = vmatprep.subr.mxu0 0.0
    %217 = vmatpush1.msra.mxu0 %v188
    %218 = vmatprep.subr.mxu0 0.0
    %219 = vmatpush1.msra.mxu0 %v189
    %220 = vmatprep.subr.mxu0 0.0
    %221 = vmatpush1.msra.mxu0 %v190
    %222 = vmatprep.subr.mxu0 0.0
    %223 = vmatpush1.msra.mxu0 %v191
    %224 = vmatprep.subr.mxu0 0.0
    %225 = vmatpush1.msra.mxu0 %v192
    %226 = vmatprep.subr.mxu0 0.0
    %227 = vmatpush1.msra.mxu0 %v193
    %228 = vmatprep.subr.mxu0 0.0
    %229 = vmatpush1.msra.mxu0 %v194
    %230 = vmatprep.subr.mxu0 0.0
    %231 = vmatpush1.msra.mxu0 %v195
    %232 = vmatprep.subr.mxu0 0.0
    %233 = vmatpush1.msra.mxu0 %v196
    %234 = vmatprep.subr.mxu0 0.0
    %235 = vmatpush1.msra.mxu0 %v197
    %236 = vmatprep.subr.mxu0 0.0
    %237 = vmatpush1.msra.mxu0 %v198
    %238 = vmatprep.subr.mxu0 0.0
    %239 = vmatpush1.msra.mxu0 0.0
    %240 = vmatprep.subr.mxu0 0.0
    %241 = vmatpush1.msra.mxu0 0.0
    %242 = vmatprep.subr.mxu0 0.0
    %243 = vmatpush1.msra.mxu0 0.0
    %244 = vmatprep.subr.mxu0 0.0
    %245 = vmatpush1.msra.mxu0 0.0
    %246 = vmatprep.subr.mxu0 0.0
    %247 = vmatpush1.msra.mxu0 0.0
    %248 = vmatprep.subr.mxu0 0.0
    %249 = vmatpush1.msra.mxu0 0.0
    %250 = vmatprep.subr.mxu0 0.0
    %251 = vmatpush1.msra.mxu0 0.0
    %252 = vmatprep.subr.mxu0 0.0
    %253 = vmatpush1.msra.mxu0 0.0
    %254 = vmatprep.subr.mxu0 0.0
    %255 = vmatpush1.msra.mxu0 0.0
    %256 = vmatprep.subr.mxu0 0.0
    %257 = vmatpush1.msra.mxu0 0.0
    %258 = vmatprep.subr.mxu0 0.0
    %259 = vmatpush1.msra.mxu0 0.0
    %260 = vmatprep.subr.mxu0 0.0
    %261 = vmatpush1.msra.mxu0 0.0
    %262 = vmatprep.subr.mxu0 0.0
    %263 = vmatpush1.msra.mxu0 0.0
    %264 = vmatprep.subr.mxu0 0.0
    %265 = vmatpush1.msra.mxu0 0.0
    %266 = vmatprep.subr.mxu0 0.0
    %267 = vmatpush1.msra.mxu0 0.0
    %268 = vmatprep.subr.mxu0 0.0
    %269 = vmatpush1.msra.mxu0 0.0
    %270 = vmatprep.mubr.f32.mxu0 0.0
    %271 = vmatmul.mubr.f32.gmra.mrb[0].mxu0 %v182
    %v272 = vpop.f32.mrb[0].mxu0
    %v273 = vadd.f32 %v204, %v272
    %v274 = vpop.f32.mrb[0].mxu0
    %275 = vdwg.mxu0
    %v276 = vmax.f32 %v273, 0.0
    %v277 = vld [vmem:[#allocation7] sm:$0xff]
    %v278 = vld [vmem:[#allocation7 + $0x8] sm:$0xff]
    %v279 = vld [vmem:[#allocation7 + $0x10] sm:$0xff]
    %v280 = vld [vmem:[#allocation7 + $0x18] sm:$0xff]
    %v281 = vld [vmem:[#allocation7 + $0x20] sm:$0xff]
    %v282 = vld [vmem:[#allocation7 + $0x28] sm:$0xff]
    %v283 = vld [vmem:[#allocation7 + $0x30] sm:$0xff]
    %v284 = vld [vmem:[#allocation7 + $0x38] sm:$0xff]
    %v285 = vld [vmem:[#allocation7 + $0x40] sm:$0xff]
    %v286 = vld [vmem:[#allocation7 + $0x48] sm:$0xff]
    %v287 = vld [vmem:[#allocation7 + $0x50] sm:$0xff]
    %v288 = vld [vmem:[#allocation7 + $0x58] sm:$0xff]
    %v289 = vld [vmem:[#allocation7 + $0x60] sm:$0xff]
    %v290 = vld [vmem:[#allocation7 + $0x68] sm:$0xff]
    %v291 = vld [vmem:[#allocation7 + $0x70] sm:$0xff]
    %v292 = vld [vmem:[#allocation7 + $0x78] sm:$0xff]
    %v293 = vld [vmem:[%s6] sm:$0x1]
    %v295 = vlaneseq
    %v296 = vshrl.u32 %v295, 7
    %v297 = vsub.s32 0, %v296
    %v298 = vrot.slane %v293, %v297
    %300 = vmatprep.subr.mxu0 0.0
    %301 = vmatpush1.msra.mxu0 %v277
    %302 = vmatprep.subr.mxu0 0.0
    %303 = vmatpush1.msra.mxu0 %v278
    %304 = vmatprep.subr.mxu0 0.0
    %305 = vmatpush1.msra.mxu0 %v279
    %306 = vmatprep.subr.mxu0 0.0
    %307 = vmatpush1.msra.mxu0 %v280
    %308 = vmatprep.subr.mxu0 0.0
    %309 = vmatpush1.msra.mxu0 %v281
    %310 = vmatprep.subr.mxu0 0.0
    %311 = vmatpush1.msra.mxu0 %v282
    %312 = vmatprep.subr.mxu0 0.0
    %313 = vmatpush1.msra.mxu0 %v283
    %314 = vmatprep.subr.mxu0 0.0
    %315 = vmatpush1.msra.mxu0 %v284
    %316 = vmatprep.subr.mxu0 0.0
    %317 = vmatpush1.msra.mxu0 %v285
    %318 = vmatprep.subr.mxu0 0.0
    %319 = vmatpush1.msra.mxu0 %v286
    %320 = vmatprep.subr.mxu0 0.0
    %321 = vmatpush1.msra.mxu0 %v287
    %322 = vmatprep.subr.mxu0 0.0
    %323 = vmatpush1.msra.mxu0 %v288
    %324 = vmatprep.subr.mxu0 0.0
    %325 = vmatpush1.msra.mxu0 %v289
    %326 = vmatprep.subr.mxu0 0.0
    %327 = vmatpush1.msra.mxu0 %v290
    %328 = vmatprep.subr.mxu0 0.0
    %329 = vmatpush1.msra.mxu0 %v291
    %330 = vmatprep.subr.mxu0 0.0
    %331 = vmatpush1.msra.mxu0 %v292
    %332 = vmatprep.subr.mxu0 0.0
    %333 = vmatpush1.msra.mxu0 0.0
    %334 = vmatprep.subr.mxu0 0.0
    %335 = vmatpush1.msra.mxu0 0.0
    %336 = vmatprep.subr.mxu0 0.0
    %337 = vmatpush1.msra.mxu0 0.0
    %338 = vmatprep.subr.mxu0 0.0
    %339 = vmatpush1.msra.mxu0 0.0
    %340 = vmatprep.subr.mxu0 0.0
    %341 = vmatpush1.msra.mxu0 0.0
    %342 = vmatprep.subr.mxu0 0.0
    %343 = vmatpush1.msra.mxu0 0.0
    %344 = vmatprep.subr.mxu0 0.0
    %345 = vmatpush1.msra.mxu0 0.0
    %346 = vmatprep.subr.mxu0 0.0
    %347 = vmatpush1.msra.mxu0 0.0
    %348 = vmatprep.subr.mxu0 0.0
    %349 = vmatpush1.msra.mxu0 0.0
    %350 = vmatprep.subr.mxu0 0.0
    %351 = vmatpush1.msra.mxu0 0.0
    %352 = vmatprep.subr.mxu0 0.0
    %353 = vmatpush1.msra.mxu0 0.0
    %354 = vmatprep.subr.mxu0 0.0
    %355 = vmatpush1.msra.mxu0 0.0
    %356 = vmatprep.subr.mxu0 0.0
    %357 = vmatpush1.msra.mxu0 0.0
    %358 = vmatprep.subr.mxu0 0.0
    %359 = vmatpush1.msra.mxu0 0.0
    %360 = vmatprep.subr.mxu0 0.0
    %361 = vmatpush1.msra.mxu0 0.0
    %362 = vmatprep.subr.mxu0 0.0
    %363 = vmatpush1.msra.mxu0 0.0
    %364 = vmatprep.mubr.f32.mxu0 0.0
    %365 = vmatmul.mubr.f32.gmra.mrb[0].mxu0 %v276
    %v366 = vpop.f32.mrb[0].mxu0
    %v367 = vadd.f32 %v298, %v366
    %v368 = vpop.f32.mrb[0].mxu0
    %369 = vdwg.mxu0
    %v370 = vmax.f32 %v367, 0.0
    %v371 = vld [vmem:[#allocation8] sm:$0xff]
    %v372 = vld [vmem:[#allocation8 + $0x8] sm:$0xff]
    %v373 = vld [vmem:[#allocation8 + $0x10] sm:$0xff]
    %v374 = vld [vmem:[#allocation8 + $0x18] sm:$0xff]
    %v375 = vld [vmem:[#allocation8 + $0x20] sm:$0xff]
    %v376 = vld [vmem:[#allocation8 + $0x28] sm:$0xff]
    %v377 = vld [vmem:[#allocation8 + $0x30] sm:$0xff]
    %v378 = vld [vmem:[#allocation8 + $0x38] sm:$0xff]
    %v379 = vld [vmem:[#allocation8 + $0x40] sm:$0xff]
    %v380 = vld [vmem:[#allocation8 + $0x48] sm:$0xff]
    %v381 = vld [vmem:[#allocation8 + $0x50] sm:$0xff]
    %v382 = vld [vmem:[#allocation8 + $0x58] sm:$0xff]
    %v383 = vld [vmem:[#allocation8 + $0x60] sm:$0xff]
    %v384 = vld [vmem:[#allocation8 + $0x68] sm:$0xff]
    %v385 = vld [vmem:[#allocation8 + $0x70] sm:$0xff]
    %v386 = vld [vmem:[#allocation8 + $0x78] sm:$0xff]
    %v387 = vld [vmem:[%s8] sm:$0x1]
    %v389 = vlaneseq
    %v390 = vshrl.u32 %v389, 7
    %v391 = vsub.s32 0, %v390
    %v392 = vrot.slane %v387, %v391
    %394 = vmatprep.subr.mxu0 0.0
    %395 = vmatpush1.msra.mxu0 %v371
    %396 = vmatprep.subr.mxu0 0.0
    %397 = vmatpush1.msra.mxu0 %v372
    %398 = vmatprep.subr.mxu0 0.0
    %399 = vmatpush1.msra.mxu0 %v373
    %400 = vmatprep.subr.mxu0 0.0
    %401 = vmatpush1.msra.mxu0 %v374
    %402 = vmatprep.subr.mxu0 0.0
    %403 = vmatpush1.msra.mxu0 %v375
    %404 = vmatprep.subr.mxu0 0.0
    %405 = vmatpush1.msra.mxu0 %v376
    %406 = vmatprep.subr.mxu0 0.0
    %407 = vmatpush1.msra.mxu0 %v377
    %408 = vmatprep.subr.mxu0 0.0
    %409 = vmatpush1.msra.mxu0 %v378
    %410 = vmatprep.subr.mxu0 0.0
    %411 = vmatpush1.msra.mxu0 %v379
    %412 = vmatprep.subr.mxu0 0.0
    %413 = vmatpush1.msra.mxu0 %v380
    %414 = vmatprep.subr.mxu0 0.0
    %415 = vmatpush1.msra.mxu0 %v381
    %416 = vmatprep.subr.mxu0 0.0
    %417 = vmatpush1.msra.mxu0 %v382
    %418 = vmatprep.subr.mxu0 0.0
    %419 = vmatpush1.msra.mxu0 %v383
    %420 = vmatprep.subr.mxu0 0.0
    %421 = vmatpush1.msra.mxu0 %v384
    %422 = vmatprep.subr.mxu0 0.0
    %423 = vmatpush1.msra.mxu0 %v385
    %424 = vmatprep.subr.mxu0 0.0
    %425 = vmatpush1.msra.mxu0 %v386
    %426 = vmatprep.subr.mxu0 0.0
    %427 = vmatpush1.msra.mxu0 0.0
    %428 = vmatprep.subr.mxu0 0.0
    %429 = vmatpush1.msra.mxu0 0.0
    %430 = vmatprep.subr.mxu0 0.0
    %431 = vmatpush1.msra.mxu0 0.0
    %432 = vmatprep.subr.mxu0 0.0
    %433 = vmatpush1.msra.mxu0 0.0
    %434 = vmatprep.subr.mxu0 0.0
    %435 = vmatpush1.msra.mxu0 0.0
    %436 = vmatprep.subr.mxu0 0.0
    %437 = vmatpush1.msra.mxu0 0.0
    %438 = vmatprep.subr.mxu0 0.0
    %439 = vmatpush1.msra.mxu0 0.0
    %440 = vmatprep.subr.mxu0 0.0
    %441 = vmatpush1.msra.mxu0 0.0
    %442 = vmatprep.subr.mxu0 0.0
    %443 = vmatpush1.msra.mxu0 0.0
    %444 = vmatprep.subr.mxu0 0.0
    %445 = vmatpush1.msra.mxu0 0.0
    %446 = vmatprep.subr.mxu0 0.0
    %447 = vmatpush1.msra.mxu0 0.0
    %448 = vmatprep.subr.mxu0 0.0
    %449 = vmatpush1.msra.mxu0 0.0
    %450 = vmatprep.subr.mxu0 0.0
    %451 = vmatpush1.msra.mxu0 0.0
    %452 = vmatprep.subr.mxu0 0.0
    %453 = vmatpush1.msra.mxu0 0.0
    %454 = vmatprep.subr.mxu0 0.0
    %455 = vmatpush1.msra.mxu0 0.0
    %456 = vmatprep.subr.mxu0 0.0
    %457 = vmatpush1.msra.mxu0 0.0
    %458 = vmatprep.mubr.f32.mxu0 0.0
    %459 = vmatmul.mubr.f32.gmra.mrb[0].mxu0 %v370
    %v460 = vpop.f32.mrb[0].mxu0
    %v461 = vadd.f32 %v392, %v460
    %v462 = vpop.f32.mrb[0].mxu0
    %463 = vdwg.mxu0
    %464 = vst [vmem:[#allocation10] sm:$0xff] %v461
    // Predicated region
    $region54: #{_mlp_fused.1} parent=1 // pred_check
      _
    $region55: #{_mlp_fused.1} parent=1 // pred_check_branch
      %466 = sbr.rel (0) target = $region57
    $region56: #{_mlp_fused.1} parent=1 // pred_region
      %s468 = ssub.s32 128, 128
      %469 = vsyncadd [#allocation4], %s468
      %s471 = sshll.u32 [#allocation10], 4
      %s472 = int_to_ptr.vmem [resolvable:$true] %s471
      %474 = dma.vmem_to_hbm [thread:$0]  %s472, 128, %s9, [#allocation4]
    $region57: #{_mlp_fused.1} parent=1 // pred_fallthru
      _
    // Predicated region
    $region58: #{_mlp_fused.1} parent=1 // pred_check
      _
    $region59: #{_mlp_fused.1} parent=1 // pred_check_branch
      %476 = sbr.rel (0) target = $region61
    $region60: #{_mlp_fused.1} parent=1 // pred_region
      %477 = dma.done [#allocation4], 128
    $region61: #{_mlp_fused.1} parent=1 // pred_fallthru
      _
    %478 = vsyncpa [#allocation3], 1
    %479 = vsyncpa [#allocation6], 1
    %480 = vsyncpa [#allocation9], 1
    %481 = vsyncpa [#allocation4], 1

// kernel: _mlp_fused.1
$region0: #{_mlp_fused.1}
  #allocation0 [shape = 'u32[]', space=smem, size = 0x4, offset = 0x4, fixed_abs, tag = 'smem constant byte address 0x4 - core index']
  #allocation1 [shape = 'u32[144,128]{1,0:T(1,128)}', space=vmem, size = 0x12000, scoped, tag = 'internal scratch']
  %s0 = inlined_call_operand.vmem [shape: f32[8,128], index: 0, kind: input, shape index: {}]
  %s1 = inlined_call_operand.hbm [shape: f32[128,128], index: 1, kind: input, shape index: {}]
  %s2 = inlined_call_operand.vmem [shape: f32[1,128], index: 2, kind: input, shape index: {}]
  %s3 = inlined_call_operand.hbm [shape: f32[128,128], index: 3, kind: input, shape index: {}]
  %s4 = inlined_call_operand.vmem [shape: f32[1,128], index: 4, kind: input, shape index: {}]
  %s5 = inlined_call_operand.hbm [shape: f32[128,128], index: 5, kind: input, shape index: {}]
  %s6 = inlined_call_operand.vmem [shape: f32[1,128], index: 6, kind: input, shape index: {}]
  %s7 = inlined_call_operand.hbm [shape: f32[128,128], index: 7, kind: input, shape index: {}]
  %s8 = inlined_call_operand.vmem [shape: f32[1,128], index: 8, kind: input, shape index: {}]
  %s9 = inlined_call_operand.hbm [shape: f32[8,128], index: 9, kind: output, shape index: {}]
  %s10 = sld [smem:[#allocation0]]
  $region62: #{_mlp_fused.1} parent=0
    _
  %s12 = ssub.s32 1, %s10
  %s13 = scalar_select 0, %s12, %s10
  $region1: #{_mlp_fused.1} parent=0
    #allocation2 [shape = 'u8[65536]{0}', space=vmem, size = 0x10000, scoped, tag = 'input window, operand 1, single buffered']
    #allocation3 [shape = 's32[1]{0}', space=sflag, size = 0x4, scoped, tag = 'scoped memory for _mlp_fused.1']
    #allocation4 [shape = 's32[1]{0}', space=sflag, size = 0x4, scoped, tag = 'scoped memory for _mlp_fused.1']
    #allocation5 [shape = 'u8[65536]{0}', space=vmem, size = 0x10000, scoped, tag = 'input window, operand 3, single buffered']
    #allocation6 [shape = 's32[1]{0}', space=sflag, size = 0x4, scoped, tag = 'scoped memory for _mlp_fused.1']
    #allocation7 [shape = 'u8[65536]{0}', space=vmem, size = 0x10000, scoped, tag = 'input window, operand 5, single buffered']
    #allocation8 [shape = 'u8[65536]{0}', space=vmem, size = 0x10000, scoped, tag = 'input window, operand 7, single buffered']
    #allocation9 [shape = 's32[1]{0}', space=sflag, size = 0x4, scoped, tag = 'scoped memory for _mlp_fused.1']
    #allocation10 [shape = 'u8[4096]{0}', space=vmem, size = 0x1000, scoped, tag = 'output window, operand 0, single buffered']
    %14 = vsyncpa [#allocation3], 0
    %15 = vsyncpa [#allocation6], 0
    %16 = vsyncpa [#allocation9], 0
    %17 = vsyncpa [#allocation4], 0
    // Predicated region
    $region2: #{_mlp_fused.1} parent=1 // pred_check
      _
    $region3: #{_mlp_fused.1} parent=1 // pred_check_branch
      %19 = sbr.rel (0) target = $region5
    $region4: #{_mlp_fused.1} parent=1 // pred_region
      _
    $region5: #{_mlp_fused.1} parent=1 // pred_fallthru
      _
    // Predicated region
    $region6: #{_mlp_fused.1} parent=1 // pred_check
      _
    $region7: #{_mlp_fused.1} parent=1 // pred_check_branch
      %21 = sbr.rel (0) target = $region9
    $region8: #{_mlp_fused.1} parent=1 // pred_region
      %s23 = ssub.s32 2048, 2048
      %24 = vsyncadd [#allocation3], %s23
      %s25 = sshll.u32 [#allocation2], 4
      %s26 = int_to_ptr.vmem [resolvable:$true] %s25
      %31 = dma.hbm_to_vmem [thread:$0]  %s1, 2048, %s26, [#allocation3], 128, 128, 8
    $region9: #{_mlp_fused.1} parent=1 // pred_fallthru
      _
    // Predicated region
    $region10: #{_mlp_fused.1} parent=1 // pred_check
      _
    $region11: #{_mlp_fused.1} parent=1 // pred_check_branch
      %33 = sbr.rel (0) target = $region13
    $region12: #{_mlp_fused.1} parent=1 // pred_region
      _
    $region13: #{_mlp_fused.1} parent=1 // pred_fallthru
      _
    // Predicated region
    $region14: #{_mlp_fused.1} parent=1 // pred_check
      _
    $region15: #{_mlp_fused.1} parent=1 // pred_check_branch
      %35 = sbr.rel (0) target = $region17
    $region16: #{_mlp_fused.1} parent=1 // pred_region
      %s37 = ssub.s32 2048, 2048
      %38 = vsyncadd [#allocation6], %s37
      %s39 = sshll.u32 [#allocation5], 4
      %s40 = int_to_ptr.vmem [resolvable:$true] %s39
      %45 = dma.hbm_to_vmem [thread:$0]  %s3, 2048, %s40, [#allocation6], 128, 128, 8
    $region17: #{_mlp_fused.1} parent=1 // pred_fallthru
      _
    // Predicated region
    $region18: #{_mlp_fused.1} parent=1 // pred_check
      _
    $region19: #{_mlp_fused.1} parent=1 // pred_check_branch
      %47 = sbr.rel (0) target = $region21
    $region20: #{_mlp_fused.1} parent=1 // pred_region
      _
    $region21: #{_mlp_fused.1} parent=1 // pred_fallthru
      _
    // Predicated region
    $region22: #{_mlp_fused.1} parent=1 // pred_check
      _
    $region23: #{_mlp_fused.1} parent=1 // pred_check_branch
      %49 = sbr.rel (0) target = $region25
    $region24: #{_mlp_fused.1} parent=1 // pred_region
      %s51 = ssub.s32 2048, 2048
      %52 = vsyncadd [#allocation6], %s51
      %s53 = sshll.u32 [#allocation7], 4
      %s54 = int_to_ptr.vmem [resolvable:$true] %s53
      %59 = dma.hbm_to_vmem [thread:$0]  %s5, 2048, %s54, [#allocation6], 128, 128, 8
    $region25: #{_mlp_fused.1} parent=1 // pred_fallthru
      _
    // Predicated region
    $region26: #{_mlp_fused.1} parent=1 // pred_check
      _
    $region27: #{_mlp_fused.1} parent=1 // pred_check_branch
      %61 = sbr.rel (0) target = $region29
    $region28: #{_mlp_fused.1} parent=1 // pred_region
      _
    $region29: #{_mlp_fused.1} parent=1 // pred_fallthru
      _
    // Predicated region
    $region30: #{_mlp_fused.1} parent=1 // pred_check
      _
    $region31: #{_mlp_fused.1} parent=1 // pred_check_branch
      %63 = sbr.rel (0) target = $region33
    $region32: #{_mlp_fused.1} parent=1 // pred_region
      %s65 = ssub.s32 2048, 2048
      %66 = vsyncadd [#allocation9], %s65
      %s67 = sshll.u32 [#allocation8], 4
      %s68 = int_to_ptr.vmem [resolvable:$true] %s67
      %73 = dma.hbm_to_vmem [thread:$0]  %s7, 2048, %s68, [#allocation9], 128, 128, 8
    $region33: #{_mlp_fused.1} parent=1 // pred_fallthru
      _
    // Predicated region
    $region34: #{_mlp_fused.1} parent=1 // pred_check
      _
    $region35: #{_mlp_fused.1} parent=1 // pred_check_branch
      %75 = sbr.rel (0) target = $region37
    $region36: #{_mlp_fused.1} parent=1 // pred_region
      _
    $region37: #{_mlp_fused.1} parent=1 // pred_fallthru
      _
    // Predicated region
    $region38: #{_mlp_fused.1} parent=1 // pred_check
      _
    $region39: #{_mlp_fused.1} parent=1 // pred_check_branch
      %77 = sbr.rel (0) target = $region41
    $region40: #{_mlp_fused.1} parent=1 // pred_region
      %78 = dma.done [#allocation3], 2048
    $region41: #{_mlp_fused.1} parent=1 // pred_fallthru
      _
    // Predicated region
    $region42: #{_mlp_fused.1} parent=1 // pred_check
      _
    $region43: #{_mlp_fused.1} parent=1 // pred_check_branch
      %80 = sbr.rel (0) target = $region45
    $region44: #{_mlp_fused.1} parent=1 // pred_region
      %81 = dma.done [#allocation6], 2048
    $region45: #{_mlp_fused.1} parent=1 // pred_fallthru
      _
    // Predicated region
    $region46: #{_mlp_fused.1} parent=1 // pred_check
      _
    $region47: #{_mlp_fused.1} parent=1 // pred_check_branch
      %83 = sbr.rel (0) target = $region49
    $region48: #{_mlp_fused.1} parent=1 // pred_region
      %84 = dma.done [#allocation6], 2048
    $region49: #{_mlp_fused.1} parent=1 // pred_fallthru
      _
    // Predicated region
    $region50: #{_mlp_fused.1} parent=1 // pred_check
      _
    $region51: #{_mlp_fused.1} parent=1 // pred_check_branch
      %86 = sbr.rel (0) target = $region53
    $region52: #{_mlp_fused.1} parent=1 // pred_region
      %87 = dma.done [#allocation9], 2048
    $region53: #{_mlp_fused.1} parent=1 // pred_fallthru
      _
    %v88 = vld [vmem:[%s0] sm:$0xff]
    %v89 = vld [vmem:[#allocation2] sm:$0xff]
    %v90 = vld [vmem:[#allocation2 + $0x8] sm:$0xff]
    %v91 = vld [vmem:[#allocation2 + $0x10] sm:$0xff]
    %v92 = vld [vmem:[#allocation2 + $0x18] sm:$0xff]
    %v93 = vld [vmem:[#allocation2 + $0x20] sm:$0xff]
    %v94 = vld [vmem:[#allocation2 + $0x28] sm:$0xff]
    %v95 = vld [vmem:[#allocation2 + $0x30] sm:$0xff]
    %v96 = vld [vmem:[#allocation2 + $0x38] sm:$0xff]
    %v97 = vld [vmem:[#allocation2 + $0x40] sm:$0xff]
    %v98 = vld [vmem:[#allocation2 + $0x48] sm:$0xff]
    %v99 = vld [vmem:[#allocation2 + $0x50] sm:$0xff]
    %v100 = vld [vmem:[#allocation2 + $0x58] sm:$0xff]
    %v101 = vld [vmem:[#allocation2 + $0x60] sm:$0xff]
    %v102 = vld [vmem:[#allocation2 + $0x68] sm:$0xff]
    %v103 = vld [vmem:[#allocation2 + $0x70] sm:$0xff]
    %v104 = vld [vmem:[#allocation2 + $0x78] sm:$0xff]
    %v105 = vld [vmem:[%s2] sm:$0x1]
    %v107 = vlaneseq
    %v108 = vshrl.u32 %v107, 7
    %v109 = vsub.s32 0, %v108
    %v110 = vrot.slane %v105, %v109
    %112 = vmatprep.subr.mxu0 0.0
    %113 = vmatpush1.msra.mxu0 %v89
    %114 = vmatprep.subr.mxu0 0.0
    %115 = vmatpush1.msra.mxu0 %v90
    %116 = vmatprep.subr.mxu0 0.0
    %117 = vmatpush1.msra.mxu0 %v91
    %118 = vmatprep.subr.mxu0 0.0
    %119 = vmatpush1.msra.mxu0 %v92
    %120 = vmatprep.subr.mxu0 0.0
    %121 = vmatpush1.msra.mxu0 %v93
    %122 = vmatprep.subr.mxu0 0.0
    %123 = vmatpush1.msra.mxu0 %v94
    %124 = vmatprep.subr.mxu0 0.0
    %125 = vmatpush1.msra.mxu0 %v95
    %126 = vmatprep.subr.mxu0 0.0
    %127 = vmatpush1.msra.mxu0 %v96
    %128 = vmatprep.subr.mxu0 0.0
    %129 = vmatpush1.msra.mxu0 %v97
    %130 = vmatprep.subr.mxu0 0.0
    %131 = vmatpush1.msra.mxu0 %v98
    %132 = vmatprep.subr.mxu0 0.0
    %133 = vmatpush1.msra.mxu0 %v99
    %134 = vmatprep.subr.mxu0 0.0
    %135 = vmatpush1.msra.mxu0 %v100
    %136 = vmatprep.subr.mxu0 0.0
    %137 = vmatpush1.msra.mxu0 %v101
    %138 = vmatprep.subr.mxu0 0.0
    %139 = vmatpush1.msra.mxu0 %v102
    %140 = vmatprep.subr.mxu0 0.0
    %141 = vmatpush1.msra.mxu0 %v103
    %142 = vmatprep.subr.mxu0 0.0
    %143 = vmatpush1.msra.mxu0 %v104
    %144 = vmatprep.subr.mxu0 0.0
    %145 = vmatpush1.msra.mxu0 0.0
    %146 = vmatprep.subr.mxu0 0.0
    %147 = vmatpush1.msra.mxu0 0.0
    %148 = vmatprep.subr.mxu0 0.0
    %149 = vmatpush1.msra.mxu0 0.0
    %150 = vmatprep.subr.mxu0 0.0
    %151 = vmatpush1.msra.mxu0 0.0
    %152 = vmatprep.subr.mxu0 0.0
    %153 = vmatpush1.msra.mxu0 0.0
    %154 = vmatprep.subr.mxu0 0.0
    %155 = vmatpush1.msra.mxu0 0.0
    %156 = vmatprep.subr.mxu0 0.0
    %157 = vmatpush1.msra.mxu0 0.0
    %158 = vmatprep.subr.mxu0 0.0
    %159 = vmatpush1.msra.mxu0 0.0
    %160 = vmatprep.subr.mxu0 0.0
    %161 = vmatpush1.msra.mxu0 0.0
    %162 = vmatprep.subr.mxu0 0.0
    %163 = vmatpush1.msra.mxu0 0.0
    %164 = vmatprep.subr.mxu0 0.0
    %165 = vmatpush1.msra.mxu0 0.0
    %166 = vmatprep.subr.mxu0 0.0
    %167 = vmatpush1.msra.mxu0 0.0
    %168 = vmatprep.subr.mxu0 0.0
    %169 = vmatpush1.msra.mxu0 0.0
    %170 = vmatprep.subr.mxu0 0.0
    %171 = vmatpush1.msra.mxu0 0.0
    %172 = vmatprep.subr.mxu0 0.0
    %173 = vmatpush1.msra.mxu0 0.0
    %174 = vmatprep.subr.mxu0 0.0
    %175 = vmatpush1.msra.mxu0 0.0
    %176 = vmatprep.mubr.f32.mxu0 0.0
    %177 = vmatmul.mubr.f32.gmra.mrb[0].mxu0 %v88
    %v178 = vpop.f32.mrb[0].mxu0
    %v179 = vadd.f32 %v110, %v178
    %v180 = vpop.f32.mrb[0].mxu0
    %181 = vdwg.mxu0
    %v182 = vmax.f32 %v179, 0.0
    %v183 = vld [vmem:[#allocation5] sm:$0xff]
    %v184 = vld [vmem:[#allocation5 + $0x8] sm:$0xff]
    %v185 = vld [vmem:[#allocation5 + $0x10] sm:$0xff]
    %v186 = vld [vmem:[#allocation5 + $0x18] sm:$0xff]
    %v187 = vld [vmem:[#allocation5 + $0x20] sm:$0xff]
    %v188 = vld [vmem:[#allocation5 + $0x28] sm:$0xff]
    %v189 = vld [vmem:[#allocation5 + $0x30] sm:$0xff]
    %v190 = vld [vmem:[#allocation5 + $0x38] sm:$0xff]
    %v191 = vld [vmem:[#allocation5 + $0x40] sm:$0xff]
    %v192 = vld [vmem:[#allocation5 + $0x48] sm:$0xff]
    %v193 = vld [vmem:[#allocation5 + $0x50] sm:$0xff]
    %v194 = vld [vmem:[#allocation5 + $0x58] sm:$0xff]
    %v195 = vld [vmem:[#allocation5 + $0x60] sm:$0xff]
    %v196 = vld [vmem:[#allocation5 + $0x68] sm:$0xff]
    %v197 = vld [vmem:[#allocation5 + $0x70] sm:$0xff]
    %v198 = vld [vmem:[#allocation5 + $0x78] sm:$0xff]
    %v199 = vld [vmem:[%s4] sm:$0x1]
    %v201 = vlaneseq
    %v202 = vshrl.u32 %v201, 7
    %v203 = vsub.s32 0, %v202
    %v204 = vrot.slane %v199, %v203
    %206 = vmatprep.subr.mxu0 0.0
    %207 = vmatpush1.msra.mxu0 %v183
    %208 = vmatprep.subr.mxu0 0.0
    %209 = vmatpush1.msra.mxu0 %v184
    %210 = vmatprep.subr.mxu0 0.0
    %211 = vmatpush1.msra.mxu0 %v185
    %212 = vmatprep.subr.mxu0 0.0
    %213 = vmatpush1.msra.mxu0 %v186
    %214 = vmatprep.subr.mxu0 0.0
    %215 = vmatpush1.msra.mxu0 %v187
    %216 = vmatprep.subr.mxu0 0.0
    %217 = vmatpush1.msra.mxu0 %v188
    %218 = vmatprep.subr.mxu0 0.0
    %219 = vmatpush1.msra.mxu0 %v189
    %220 = vmatprep.subr.mxu0 0.0
    %221 = vmatpush1.msra.mxu0 %v190
    %222 = vmatprep.subr.mxu0 0.0
    %223 = vmatpush1.msra.mxu0 %v191
    %224 = vmatprep.subr.mxu0 0.0
    %225 = vmatpush1.msra.mxu0 %v192
    %226 = vmatprep.subr.mxu0 0.0
    %227 = vmatpush1.msra.mxu0 %v193
    %228 = vmatprep.subr.mxu0 0.0
    %229 = vmatpush1.msra.mxu0 %v194
    %230 = vmatprep.subr.mxu0 0.0
    %231 = vmatpush1.msra.mxu0 %v195
    %232 = vmatprep.subr.mxu0 0.0
    %233 = vmatpush1.msra.mxu0 %v196
    %234 = vmatprep.subr.mxu0 0.0
    %235 = vmatpush1.msra.mxu0 %v197
    %236 = vmatprep.subr.mxu0 0.0
    %237 = vmatpush1.msra.mxu0 %v198
    %238 = vmatprep.subr.mxu0 0.0
    %239 = vmatpush1.msra.mxu0 0.0
    %240 = vmatprep.subr.mxu0 0.0
    %241 = vmatpush1.msra.mxu0 0.0
    %242 = vmatprep.subr.mxu0 0.0
    %243 = vmatpush1.msra.mxu0 0.0
    %244 = vmatprep.subr.mxu0 0.0
    %245 = vmatpush1.msra.mxu0 0.0
    %246 = vmatprep.subr.mxu0 0.0
    %247 = vmatpush1.msra.mxu0 0.0
    %248 = vmatprep.subr.mxu0 0.0
    %249 = vmatpush1.msra.mxu0 0.0
    %250 = vmatprep.subr.mxu0 0.0
    %251 = vmatpush1.msra.mxu0 0.0
    %252 = vmatprep.subr.mxu0 0.0
    %253 = vmatpush1.msra.mxu0 0.0
    %254 = vmatprep.subr.mxu0 0.0
    %255 = vmatpush1.msra.mxu0 0.0
    %256 = vmatprep.subr.mxu0 0.0
    %257 = vmatpush1.msra.mxu0 0.0
    %258 = vmatprep.subr.mxu0 0.0
    %259 = vmatpush1.msra.mxu0 0.0
    %260 = vmatprep.subr.mxu0 0.0
    %261 = vmatpush1.msra.mxu0 0.0
    %262 = vmatprep.subr.mxu0 0.0
    %263 = vmatpush1.msra.mxu0 0.0
    %264 = vmatprep.subr.mxu0 0.0
    %265 = vmatpush1.msra.mxu0 0.0
    %266 = vmatprep.subr.mxu0 0.0
    %267 = vmatpush1.msra.mxu0 0.0
    %268 = vmatprep.subr.mxu0 0.0
    %269 = vmatpush1.msra.mxu0 0.0
    %270 = vmatprep.mubr.f32.mxu0 0.0
    %271 = vmatmul.mubr.f32.gmra.mrb[0].mxu0 %v182
    %v272 = vpop.f32.mrb[0].mxu0
    %v273 = vadd.f32 %v204, %v272
    %v274 = vpop.f32.mrb[0].mxu0
    %275 = vdwg.mxu0
    %v276 = vmax.f32 %v273, 0.0
    %v277 = vld [vmem:[#allocation7] sm:$0xff]
    %v278 = vld [vmem:[#allocation7 + $0x8] sm:$0xff]
    %v279 = vld [vmem:[#allocation7 + $0x10] sm:$0xff]
    %v280 = vld [vmem:[#allocation7 + $0x18] sm:$0xff]
    %v281 = vld [vmem:[#allocation7 + $0x20] sm:$0xff]
    %v282 = vld [vmem:[#allocation7 + $0x28] sm:$0xff]
    %v283 = vld [vmem:[#allocation7 + $0x30] sm:$0xff]
    %v284 = vld [vmem:[#allocation7 + $0x38] sm:$0xff]
    %v285 = vld [vmem:[#allocation7 + $0x40] sm:$0xff]
    %v286 = vld [vmem:[#allocation7 + $0x48] sm:$0xff]
    %v287 = vld [vmem:[#allocation7 + $0x50] sm:$0xff]
    %v288 = vld [vmem:[#allocation7 + $0x58] sm:$0xff]
    %v289 = vld [vmem:[#allocation7 + $0x60] sm:$0xff]
    %v290 = vld [vmem:[#allocation7 + $0x68] sm:$0xff]
    %v291 = vld [vmem:[#allocation7 + $0x70] sm:$0xff]
    %v292 = vld [vmem:[#allocation7 + $0x78] sm:$0xff]
    %v293 = vld [vmem:[%s6] sm:$0x1]
    %v295 = vlaneseq
    %v296 = vshrl.u32 %v295, 7
    %v297 = vsub.s32 0, %v296
    %v298 = vrot.slane %v293, %v297
    %300 = vmatprep.subr.mxu0 0.0
    %301 = vmatpush1.msra.mxu0 %v277
    %302 = vmatprep.subr.mxu0 0.0
    %303 = vmatpush1.msra.mxu0 %v278
    %304 = vmatprep.subr.mxu0 0.0
    %305 = vmatpush1.msra.mxu0 %v279
    %306 = vmatprep.subr.mxu0 0.0
    %307 = vmatpush1.msra.mxu0 %v280
    %308 = vmatprep.subr.mxu0 0.0
    %309 = vmatpush1.msra.mxu0 %v281
    %310 = vmatprep.subr.mxu0 0.0
    %311 = vmatpush1.msra.mxu0 %v282
    %312 = vmatprep.subr.mxu0 0.0
    %313 = vmatpush1.msra.mxu0 %v283
    %314 = vmatprep.subr.mxu0 0.0
    %315 = vmatpush1.msra.mxu0 %v284
    %316 = vmatprep.subr.mxu0 0.0
    %317 = vmatpush1.msra.mxu0 %v285
    %318 = vmatprep.subr.mxu0 0.0
    %319 = vmatpush1.msra.mxu0 %v286
    %320 = vmatprep.subr.mxu0 0.0
    %321 = vmatpush1.msra.mxu0 %v287
    %322 = vmatprep.subr.mxu0 0.0
    %323 = vmatpush1.msra.mxu0 %v288
    %324 = vmatprep.subr.mxu0 0.0
    %325 = vmatpush1.msra.mxu0 %v289
    %326 = vmatprep.subr.mxu0 0.0
    %327 = vmatpush1.msra.mxu0 %v290
    %328 = vmatprep.subr.mxu0 0.0
    %329 = vmatpush1.msra.mxu0 %v291
    %330 = vmatprep.subr.mxu0 0.0
    %331 = vmatpush1.msra.mxu0 %v292
    %332 = vmatprep.subr.mxu0 0.0
    %333 = vmatpush1.msra.mxu0 0.0
    %334 = vmatprep.subr.mxu0 0.0
    %335 = vmatpush1.msra.mxu0 0.0
    %336 = vmatprep.subr.mxu0 0.0
    %337 = vmatpush1.msra.mxu0 0.0
    %338 = vmatprep.subr.mxu0 0.0
    %339 = vmatpush1.msra.mxu0 0.0
    %340 = vmatprep.subr.mxu0 0.0
    %341 = vmatpush1.msra.mxu0 0.0
    %342 = vmatprep.subr.mxu0 0.0
    %343 = vmatpush1.msra.mxu0 0.0
    %344 = vmatprep.subr.mxu0 0.0
    %345 = vmatpush1.msra.mxu0 0.0
    %346 = vmatprep.subr.mxu0 0.0
    %347 = vmatpush1.msra.mxu0 0.0
    %348 = vmatprep.subr.mxu0 0.0
    %349 = vmatpush1.msra.mxu0 0.0
    %350 = vmatprep.subr.mxu0 0.0
    %351 = vmatpush1.msra.mxu0 0.0
    %352 = vmatprep.subr.mxu0 0.0
    %353 = vmatpush1.msra.mxu0 0.0
    %354 = vmatprep.subr.mxu0 0.0
    %355 = vmatpush1.msra.mxu0 0.0
    %356 = vmatprep.subr.mxu0 0.0
    %357 = vmatpush1.msra.mxu0 0.0
    %358 = vmatprep.subr.mxu0 0.0
    %359 = vmatpush1.msra.mxu0 0.0
    %360 = vmatprep.subr.mxu0 0.0
    %361 = vmatpush1.msra.mxu0 0.0
    %362 = vmatprep.subr.mxu0 0.0
    %363 = vmatpush1.msra.mxu0 0.0
    %364 = vmatprep.mubr.f32.mxu0 0.0
    %365 = vmatmul.mubr.f32.gmra.mrb[0].mxu0 %v276
    %v366 = vpop.f32.mrb[0].mxu0
    %v367 = vadd.f32 %v298, %v366
    %v368 = vpop.f32.mrb[0].mxu0
    %369 = vdwg.mxu0
    %v370 = vmax.f32 %v367, 0.0
    %v371 = vld [vmem:[#allocation8] sm:$0xff]
    %v372 = vld [vmem:[#allocation8 + $0x8] sm:$0xff]
    %v373 = vld [vmem:[#allocation8 + $0x10] sm:$0xff]
    %v374 = vld [vmem:[#allocation8 + $0x18] sm:$0xff]
    %v375 = vld [vmem:[#allocation8 + $0x20] sm:$0xff]
    %v376 = vld [vmem:[#allocation8 + $0x28] sm:$0xff]
    %v377 = vld [vmem:[#allocation8 + $0x30] sm:$0xff]
    %v378 = vld [vmem:[#allocation8 + $0x38] sm:$0xff]
    %v379 = vld [vmem:[#allocation8 + $0x40] sm:$0xff]
    %v380 = vld [vmem:[#allocation8 + $0x48] sm:$0xff]
    %v381 = vld [vmem:[#allocation8 + $0x50] sm:$0xff]
    %v382 = vld [vmem:[#allocation8 + $0x58] sm:$0xff]
    %v383 = vld [vmem:[#allocation8 + $0x60] sm:$0xff]
    %v384 = vld [vmem:[#allocation8 + $0x68] sm:$0xff]
    %v385 = vld [vmem:[#allocation8 + $0x70] sm:$0xff]
    %v386 = vld [vmem:[#allocation8 + $0x78] sm:$0xff]
    %v387 = vld [vmem:[%s8] sm:$0x1]
    %v389 = vlaneseq
    %v390 = vshrl.u32 %v389, 7
    %v391 = vsub.s32 0, %v390
    %v392 = vrot.slane %v387, %v391
    %394 = vmatprep.subr.mxu0 0.0
    %395 = vmatpush1.msra.mxu0 %v371
    %396 = vmatprep.subr.mxu0 0.0
    %397 = vmatpush1.msra.mxu0 %v372
    %398 = vmatprep.subr.mxu0 0.0
    %399 = vmatpush1.msra.mxu0 %v373
    %400 = vmatprep.subr.mxu0 0.0
    %401 = vmatpush1.msra.mxu0 %v374
    %402 = vmatprep.subr.mxu0 0.0
    %403 = vmatpush1.msra.mxu0 %v375
    %404 = vmatprep.subr.mxu0 0.0
    %405 = vmatpush1.msra.mxu0 %v376
    %406 = vmatprep.subr.mxu0 0.0
    %407 = vmatpush1.msra.mxu0 %v377
    %408 = vmatprep.subr.mxu0 0.0
    %409 = vmatpush1.msra.mxu0 %v378
    %410 = vmatprep.subr.mxu0 0.0
    %411 = vmatpush1.msra.mxu0 %v379
    %412 = vmatprep.subr.mxu0 0.0
    %413 = vmatpush1.msra.mxu0 %v380
    %414 = vmatprep.subr.mxu0 0.0
    %415 = vmatpush1.msra.mxu0 %v381
    %416 = vmatprep.subr.mxu0 0.0
    %417 = vmatpush1.msra.mxu0 %v382
    %418 = vmatprep.subr.mxu0 0.0
    %419 = vmatpush1.msra.mxu0 %v383
    %420 = vmatprep.subr.mxu0 0.0
    %421 = vmatpush1.msra.mxu0 %v384
    %422 = vmatprep.subr.mxu0 0.0
    %423 = vmatpush1.msra.mxu0 %v385
    %424 = vmatprep.subr.mxu0 0.0
    %425 = vmatpush1.msra.mxu0 %v386
    %426 = vmatprep.subr.mxu0 0.0
    %427 = vmatpush1.msra.mxu0 0.0
    %428 = vmatprep.subr.mxu0 0.0
    %429 = vmatpush1.msra.mxu0 0.0
    %430 = vmatprep.subr.mxu0 0.0
    %431 = vmatpush1.msra.mxu0 0.0
    %432 = vmatprep.subr.mxu0 0.0
    %433 = vmatpush1.msra.mxu0 0.0
    %434 = vmatprep.subr.mxu0 0.0
    %435 = vmatpush1.msra.mxu0 0.0
    %436 = vmatprep.subr.mxu0 0.0
    %437 = vmatpush1.msra.mxu0 0.0
    %438 = vmatprep.subr.mxu0 0.0
    %439 = vmatpush1.msra.mxu0 0.0
    %440 = vmatprep.subr.mxu0 0.0
    %441 = vmatpush1.msra.mxu0 0.0
    %442 = vmatprep.subr.mxu0 0.0
    %443 = vmatpush1.msra.mxu0 0.0
    %444 = vmatprep.subr.mxu0 0.0
    %445 = vmatpush1.msra.mxu0 0.0
    %446 = vmatprep.subr.mxu0 0.0
    %447 = vmatpush1.msra.mxu0 0.0
    %448 = vmatprep.subr.mxu0 0.0
    %449 = vmatpush1.msra.mxu0 0.0
    %450 = vmatprep.subr.mxu0 0.0
    %451 = vmatpush1.msra.mxu0 0.0
    %452 = vmatprep.subr.mxu0 0.0
    %453 = vmatpush1.msra.mxu0 0.0
    %454 = vmatprep.subr.mxu0 0.0
    %455 = vmatpush1.msra.mxu0 0.0
    %456 = vmatprep.subr.mxu0 0.0
    %457 = vmatpush1.msra.mxu0 0.0
    %458 = vmatprep.mubr.f32.mxu0 0.0
    %459 = vmatmul.mubr.f32.gmra.mrb[0].mxu0 %v370
    %v460 = vpop.f32.mrb[0].mxu0
    %v461 = vadd.f32 %v392, %v460
    %v462 = vpop.f32.mrb[0].mxu0
    %463 = vdwg.mxu0
    %464 = vst [vmem:[#allocation10] sm:$0xff] %v461
    // Predicated region
    $region54: #{_mlp_fused.1} parent=1 // pred_check
      _
    $region55: #{_mlp_fused.1} parent=1 // pred_check_branch
      %466 = sbr.rel (0) target = $region57
    $region56: #{_mlp_fused.1} parent=1 // pred_region
      %s468 = ssub.s32 128, 128
      %469 = vsyncadd [#allocation4], %s468
      %s471 = sshll.u32 [#allocation10], 4
      %s472 = int_to_ptr.vmem [resolvable:$true] %s471
      %474 = dma.vmem_to_hbm [thread:$0]  %s472, 128, %s9, [#allocation4]
    $region57: #{_mlp_fused.1} parent=1 // pred_fallthru
      _
    // Predicated region
    $region58: #{_mlp_fused.1} parent=1 // pred_check
      _
    $region59: #{_mlp_fused.1} parent=1 // pred_check_branch
      %476 = sbr.rel (0) target = $region61
    $region60: #{_mlp_fused.1} parent=1 // pred_region
      %477 = dma.done [#allocation4], 128
    $region61: #{_mlp_fused.1} parent=1 // pred_fallthru
      _
    %478 = vsyncpa [#allocation3], 1
    %479 = vsyncpa [#allocation6], 1
    %480 = vsyncpa [#allocation9], 1
    %481 = vsyncpa [#allocation4], 1

// kernel: _mlp_streamed.5
$region0: #{_mlp_streamed.5}
  #allocation0 [shape = 'u32[]', space=smem, size = 0x4, offset = 0x4, fixed_abs, tag = 'smem constant byte address 0x4 - core index']
  #allocation1 [shape = 'u32[144,128]{1,0:T(1,128)}', space=vmem, size = 0x12000, scoped, tag = 'internal scratch']
  #allocation2 [shape = 'f32[8,128]{1,0:T(8,128)}', space=vmem, size = 0x1000, scoped, tag = 'scratch operand']
  %s0 = inlined_call_operand.vmem [shape: f32[8,128], index: 0, kind: input, shape index: {}]
  %s1 = inlined_call_operand.vmem [shape: f32[128,128], index: 1, kind: input, shape index: {}]
  %s2 = inlined_call_operand.vmem [shape: f32[1,128], index: 2, kind: input, shape index: {}]
  %s3 = inlined_call_operand.vmem [shape: f32[8,128], index: 3, kind: output, shape index: {}]
  %s4 = sld [smem:[#allocation0]]
  $region30: #{_mlp_streamed.5} parent=0
    _
  %s6 = ssub.s32 1, %s4
  %s7 = scalar_select 0, %s6, %s4
  // Predicated region
  $region2: #{_mlp_streamed.5} parent=0 // pred_check
    _
  $region3: #{_mlp_streamed.5} parent=0 // pred_check_branch
    %9 = sbr.rel (0) target = $region5
  $region4: #{_mlp_streamed.5} parent=0 // pred_region
    _
  $region5: #{_mlp_streamed.5} parent=0 // pred_fallthru
    _
  // Predicated region
  $region6: #{_mlp_streamed.5} parent=0 // pred_check
    _
  $region7: #{_mlp_streamed.5} parent=0 // pred_check_branch
    %11 = sbr.rel (0) target = $region9
  $region8: #{_mlp_streamed.5} parent=0 // pred_region
    _
  $region9: #{_mlp_streamed.5} parent=0 // pred_fallthru
    _
  // Predicated region
  $region10: #{_mlp_streamed.5} parent=0 // pred_check
    _
  $region11: #{_mlp_streamed.5} parent=0 // pred_check_branch
    %13 = sbr.rel (0) target = $region13
  $region12: #{_mlp_streamed.5} parent=0 // pred_region
    _
  $region13: #{_mlp_streamed.5} parent=0 // pred_fallthru
    _
  %p14 = scmp.eq.s32.totalorder 0, 0
  // Predicated region
  $region14: #{_mlp_streamed.5} parent=0 // pred_check
    %p15 = pneg %p14
  $region15: #{_mlp_streamed.5} parent=0 // pred_check_branch
    %17 = sbr.rel (%p15) target = $region17
  $region16: #{_mlp_streamed.5} parent=0 // pred_region
    %18 = vst [vmem:[#allocation2] sm:$0xff] 0.0
  $region17: #{_mlp_streamed.5} parent=0 // pred_fallthru
    _
  %v19 = vld [vmem:[#allocation2] sm:$0xff]
  %v20 = vld [vmem:[%s0] sm:$0xff]
  %v21 = vld [vmem:[%s1] sm:$0xff]
  %v22 = vld [vmem:[%s1 + $0x8] sm:$0xff]
  %v23 = vld [vmem:[%s1 + $0x10] sm:$0xff]
  %v24 = vld [vmem:[%s1 + $0x18] sm:$0xff]
  %v25 = vld [vmem:[%s1 + $0x20] sm:$0xff]
  %v26 = vld [vmem:[%s1 + $0x28] sm:$0xff]
  %v27 = vld [vmem:[%s1 + $0x30] sm:$0xff]
  %v28 = vld [vmem:[%s1 + $0x38] sm:$0xff]
  %v29 = vld [vmem:[%s1 + $0x40] sm:$0xff]
  %v30 = vld [vmem:[%s1 + $0x48] sm:$0xff]
  %v31 = vld [vmem:[%s1 + $0x50] sm:$0xff]
  %v32 = vld [vmem:[%s1 + $0x58] sm:$0xff]
  %v33 = vld [vmem:[%s1 + $0x60] sm:$0xff]
  %v34 = vld [vmem:[%s1 + $0x68] sm:$0xff]
  %v35 = vld [vmem:[%s1 + $0x70] sm:$0xff]
  %v36 = vld [vmem:[%s1 + $0x78] sm:$0xff]
  %37 = vmatprep.subr.mxu0 0.0
  %38 = vmatpush1.msra.mxu0 %v21
  %39 = vmatprep.subr.mxu0 0.0
  %40 = vmatpush1.msra.mxu0 %v22
  %41 = vmatprep.subr.mxu0 0.0
  %42 = vmatpush1.msra.mxu0 %v23
  %43 = vmatprep.subr.mxu0 0.0
  %44 = vmatpush1.msra.mxu0 %v24
  %45 = vmatprep.subr.mxu0 0.0
  %46 = vmatpush1.msra.mxu0 %v25
  %47 = vmatprep.subr.mxu0 0.0
  %48 = vmatpush1.msra.mxu0 %v26
  %49 = vmatprep.subr.mxu0 0.0
  %50 = vmatpush1.msra.mxu0 %v27
  %51 = vmatprep.subr.mxu0 0.0
  %52 = vmatpush1.msra.mxu0 %v28
  %53 = vmatprep.subr.mxu0 0.0
  %54 = vmatpush1.msra.mxu0 %v29
  %55 = vmatprep.subr.mxu0 0.0
  %56 = vmatpush1.msra.mxu0 %v30
  %57 = vmatprep.subr.mxu0 0.0
  %58 = vmatpush1.msra.mxu0 %v31
  %59 = vmatprep.subr.mxu0 0.0
  %60 = vmatpush1.msra.mxu0 %v32
  %61 = vmatprep.subr.mxu0 0.0
  %62 = vmatpush1.msra.mxu0 %v33
  %63 = vmatprep.subr.mxu0 0.0
  %64 = vmatpush1.msra.mxu0 %v34
  %65 = vmatprep.subr.mxu0 0.0
  %66 = vmatpush1.msra.mxu0 %v35
  %67 = vmatprep.subr.mxu0 0.0
  %68 = vmatpush1.msra.mxu0 %v36
  %69 = vmatprep.subr.mxu0 0.0
  %70 = vmatpush1.msra.mxu0 0.0
  %71 = vmatprep.subr.mxu0 0.0
  %72 = vmatpush1.msra.mxu0 0.0
  %73 = vmatprep.subr.mxu0 0.0
  %74 = vmatpush1.msra.mxu0 0.0
  %75 = vmatprep.subr.mxu0 0.0
  %76 = vmatpush1.msra.mxu0 0.0
  %77 = vmatprep.subr.mxu0 0.0
  %78 = vmatpush1.msra.mxu0 0.0
  %79 = vmatprep.subr.mxu0 0.0
  %80 = vmatpush1.msra.mxu0 0.0
  %81 = vmatprep.subr.mxu0 0.0
  %82 = vmatpush1.msra.mxu0 0.0
  %83 = vmatprep.subr.mxu0 0.0
  %84 = vmatpush1.msra.mxu0 0.0
  %85 = vmatprep.subr.mxu0 0.0
  %86 = vmatpush1.msra.mxu0 0.0
  %87 = vmatprep.subr.mxu0 0.0
  %88 = vmatpush1.msra.mxu0 0.0
  %89 = vmatprep.subr.mxu0 0.0
  %90 = vmatpush1.msra.mxu0 0.0
  %91 = vmatprep.subr.mxu0 0.0
  %92 = vmatpush1.msra.mxu0 0.0
  %93 = vmatprep.subr.mxu0 0.0
  %94 = vmatpush1.msra.mxu0 0.0
  %95 = vmatprep.subr.mxu0 0.0
  %96 = vmatpush1.msra.mxu0 0.0
  %97 = vmatprep.subr.mxu0 0.0
  %98 = vmatpush1.msra.mxu0 0.0
  %99 = vmatprep.subr.mxu0 0.0
  %100 = vmatpush1.msra.mxu0 0.0
  %101 = vmatprep.mubr.f32.mxu0 0.0
  %102 = vmatmul.mubr.f32.gmra.mrb[0].mxu0 %v20
  %v103 = vpop.f32.mrb[0].mxu0
  %v104 = vadd.f32 0.0, %v103
  %v105 = vpop.f32.mrb[0].mxu0
  %106 = vdwg.mxu0
  %v107 = vadd.f32 %v19, %v104
  %108 = vst [vmem:[#allocation2] sm:$0xff] %v107
  // Predicated region
  $region18: #{_mlp_streamed.5} parent=0 // pred_check
    %p109 = pneg %p14
  $region19: #{_mlp_streamed.5} parent=0 // pred_check_branch
    %111 = sbr.rel (%p109) target = $region21
  $region20: #{_mlp_streamed.5} parent=0 // pred_region
    %v112 = vld [vmem:[#allocation2] sm:$0xff]
    %v113 = vld [vmem:[%s2] sm:$0x1]
    %v115 = vlaneseq
    %v116 = vshrl.u32 %v115, 7
    %v117 = vsub.s32 0, %v116
    %v118 = vrot.slane %v113, %v117
    %v120 = vadd.f32 %v112, %v118
    %v121 = vmax.f32 %v120, 0.0
    %122 = vst [vmem:[%s3] sm:$0xff] %v121
  $region21: #{_mlp_streamed.5} parent=0 // pred_fallthru
    _
  // Predicated region
  $region22: #{_mlp_streamed.5} parent=0 // pred_check
    _
  $region23: #{_mlp_streamed.5} parent=0 // pred_check_branch
    %124 = sbr.rel (0) target = $region25
  $region24: #{_mlp_streamed.5} parent=0 // pred_region
    _
  $region25: #{_mlp_streamed.5} parent=0 // pred_fallthru
    _
  // Predicated region
  $region26: #{_mlp_streamed.5} parent=0 // pred_check
    _
  $region27: #{_mlp_streamed.5} parent=0 // pred_check_branch
    %126 = sbr.rel (0) target = $region29
  $region28: #{_mlp_streamed.5} parent=0 // pred_region
    _
  $region29: #{_mlp_streamed.5} parent=0 // pred_fallthru
    _

// kernel: _mlp_streamed.7
$region0: #{_mlp_streamed.7}
  #allocation0 [shape = 'u32[]', space=smem, size = 0x4, offset = 0x4, fixed_abs, tag = 'smem constant byte address 0x4 - core index']
  #allocation1 [shape = 'u32[144,128]{1,0:T(1,128)}', space=vmem, size = 0x12000, scoped, tag = 'internal scratch']
  #allocation2 [shape = 'f32[8,128]{1,0:T(8,128)}', space=vmem, size = 0x1000, scoped, tag = 'scratch operand']
  %s0 = inlined_call_operand.vmem [shape: f32[8,128], index: 0, kind: input, shape index: {}]
  %s1 = inlined_call_operand.vmem [shape: f32[128,128], index: 1, kind: input, shape index: {}]
  %s2 = inlined_call_operand.vmem [shape: f32[1,128], index: 2, kind: input, shape index: {}]
  %s3 = inlined_call_operand.hbm [shape: f32[8,128], index: 3, kind: output, shape index: {}]
  %s4 = sld [smem:[#allocation0]]
  $region30: #{_mlp_streamed.7} parent=0
    _
  %s6 = ssub.s32 1, %s4
  %s7 = scalar_select 0, %s6, %s4
  $region1: #{_mlp_streamed.7} parent=0
    #allocation3 [shape = 'u8[4096]{0}', space=vmem, size = 0x1000, scoped, tag = 'output window, operand 0, single buffered']
    #allocation4 [shape = 's32[1]{0}', space=sflag, size = 0x4, scoped, tag = 'scoped memory for _mlp_streamed.7']
    %8 = vsyncpa [#allocation4], 0
    // Predicated region
    $region2: #{_mlp_streamed.7} parent=1 // pred_check
      _
    $region3: #{_mlp_streamed.7} parent=1 // pred_check_branch
      %10 = sbr.rel (0) target = $region5
    $region4: #{_mlp_streamed.7} parent=1 // pred_region
      _
    $region5: #{_mlp_streamed.7} parent=1 // pred_fallthru
      _
    // Predicated region
    $region6: #{_mlp_streamed.7} parent=1 // pred_check
      _
    $region7: #{_mlp_streamed.7} parent=1 // pred_check_branch
      %12 = sbr.rel (0) target = $region9
    $region8: #{_mlp_streamed.7} parent=1 // pred_region
      _
    $region9: #{_mlp_streamed.7} parent=1 // pred_fallthru
      _
    // Predicated region
    $region10: #{_mlp_streamed.7} parent=1 // pred_check
      _
    $region11: #{_mlp_streamed.7} parent=1 // pred_check_branch
      %14 = sbr.rel (0) target = $region13
    $region12: #{_mlp_streamed.7} parent=1 // pred_region
      _
    $region13: #{_mlp_streamed.7} parent=1 // pred_fallthru
      _
    %p15 = scmp.eq.s32.totalorder 0, 0
    // Predicated region
    $region14: #{_mlp_streamed.7} parent=1 // pred_check
      %p16 = pneg %p15
    $region15: #{_mlp_streamed.7} parent=1 // pred_check_branch
      %18 = sbr.rel (%p16) target = $region17
    $region16: #{_mlp_streamed.7} parent=1 // pred_region
      %19 = vst [vmem:[#allocation2] sm:$0xff] 0.0
    $region17: #{_mlp_streamed.7} parent=1 // pred_fallthru
      _
    %v20 = vld [vmem:[#allocation2] sm:$0xff]
    %v21 = vld [vmem:[%s0] sm:$0xff]
    %v22 = vld [vmem:[%s1] sm:$0xff]
    %v23 = vld [vmem:[%s1 + $0x8] sm:$0xff]
    %v24 = vld [vmem:[%s1 + $0x10] sm:$0xff]
    %v25 = vld [vmem:[%s1 + $0x18] sm:$0xff]
    %v26 = vld [vmem:[%s1 + $0x20] sm:$0xff]
    %v27 = vld [vmem:[%s1 + $0x28] sm:$0xff]
    %v28 = vld [vmem:[%s1 + $0x30] sm:$0xff]
    %v29 = vld [vmem:[%s1 + $0x38] sm:$0xff]
    %v30 = vld [vmem:[%s1 + $0x40] sm:$0xff]
    %v31 = vld [vmem:[%s1 + $0x48] sm:$0xff]
    %v32 = vld [vmem:[%s1 + $0x50] sm:$0xff]
    %v33 = vld [vmem:[%s1 + $0x58] sm:$0xff]
    %v34 = vld [vmem:[%s1 + $0x60] sm:$0xff]
    %v35 = vld [vmem:[%s1 + $0x68] sm:$0xff]
    %v36 = vld [vmem:[%s1 + $0x70] sm:$0xff]
    %v37 = vld [vmem:[%s1 + $0x78] sm:$0xff]
    %38 = vmatprep.subr.mxu0 0.0
    %39 = vmatpush1.msra.mxu0 %v22
    %40 = vmatprep.subr.mxu0 0.0
    %41 = vmatpush1.msra.mxu0 %v23
    %42 = vmatprep.subr.mxu0 0.0
    %43 = vmatpush1.msra.mxu0 %v24
    %44 = vmatprep.subr.mxu0 0.0
    %45 = vmatpush1.msra.mxu0 %v25
    %46 = vmatprep.subr.mxu0 0.0
    %47 = vmatpush1.msra.mxu0 %v26
    %48 = vmatprep.subr.mxu0 0.0
    %49 = vmatpush1.msra.mxu0 %v27
    %50 = vmatprep.subr.mxu0 0.0
    %51 = vmatpush1.msra.mxu0 %v28
    %52 = vmatprep.subr.mxu0 0.0
    %53 = vmatpush1.msra.mxu0 %v29
    %54 = vmatprep.subr.mxu0 0.0
    %55 = vmatpush1.msra.mxu0 %v30
    %56 = vmatprep.subr.mxu0 0.0
    %57 = vmatpush1.msra.mxu0 %v31
    %58 = vmatprep.subr.mxu0 0.0
    %59 = vmatpush1.msra.mxu0 %v32
    %60 = vmatprep.subr.mxu0 0.0
    %61 = vmatpush1.msra.mxu0 %v33
    %62 = vmatprep.subr.mxu0 0.0
    %63 = vmatpush1.msra.mxu0 %v34
    %64 = vmatprep.subr.mxu0 0.0
    %65 = vmatpush1.msra.mxu0 %v35
    %66 = vmatprep.subr.mxu0 0.0
    %67 = vmatpush1.msra.mxu0 %v36
    %68 = vmatprep.subr.mxu0 0.0
    %69 = vmatpush1.msra.mxu0 %v37
    %70 = vmatprep.subr.mxu0 0.0
    %71 = vmatpush1.msra.mxu0 0.0
    %72 = vmatprep.subr.mxu0 0.0
    %73 = vmatpush1.msra.mxu0 0.0
    %74 = vmatprep.subr.mxu0 0.0
    %75 = vmatpush1.msra.mxu0 0.0
    %76 = vmatprep.subr.mxu0 0.0
    %77 = vmatpush1.msra.mxu0 0.0
    %78 = vmatprep.subr.mxu0 0.0
    %79 = vmatpush1.msra.mxu0 0.0
    %80 = vmatprep.subr.mxu0 0.0
    %81 = vmatpush1.msra.mxu0 0.0
    %82 = vmatprep.subr.mxu0 0.0
    %83 = vmatpush1.msra.mxu0 0.0
    %84 = vmatprep.subr.mxu0 0.0
    %85 = vmatpush1.msra.mxu0 0.0
    %86 = vmatprep.subr.mxu0 0.0
    %87 = vmatpush1.msra.mxu0 0.0
    %88 = vmatprep.subr.mxu0 0.0
    %89 = vmatpush1.msra.mxu0 0.0
    %90 = vmatprep.subr.mxu0 0.0
    %91 = vmatpush1.msra.mxu0 0.0
    %92 = vmatprep.subr.mxu0 0.0
    %93 = vmatpush1.msra.mxu0 0.0
    %94 = vmatprep.subr.mxu0 0.0
    %95 = vmatpush1.msra.mxu0 0.0
    %96 = vmatprep.subr.mxu0 0.0
    %97 = vmatpush1.msra.mxu0 0.0
    %98 = vmatprep.subr.mxu0 0.0
    %99 = vmatpush1.msra.mxu0 0.0
    %100 = vmatprep.subr.mxu0 0.0
    %101 = vmatpush1.msra.mxu0 0.0
    %102 = vmatprep.mubr.f32.mxu0 0.0
    %103 = vmatmul.mubr.f32.gmra.mrb[0].mxu0 %v21
    %v104 = vpop.f32.mrb[0].mxu0
    %v105 = vadd.f32 0.0, %v104
    %v106 = vpop.f32.mrb[0].mxu0
    %107 = vdwg.mxu0
    %v108 = vadd.f32 %v20, %v105
    %109 = vst [vmem:[#allocation2] sm:$0xff] %v108
    // Predicated region
    $region18: #{_mlp_streamed.7} parent=1 // pred_check
      %p110 = pneg %p15
    $region19: #{_mlp_streamed.7} parent=1 // pred_check_branch
      %112 = sbr.rel (%p110) target = $region21
    $region20: #{_mlp_streamed.7} parent=1 // pred_region
      %v113 = vld [vmem:[#allocation2] sm:$0xff]
      %v114 = vld [vmem:[%s2] sm:$0x1]
      %v116 = vlaneseq
      %v117 = vshrl.u32 %v116, 7
      %v118 = vsub.s32 0, %v117
      %v119 = vrot.slane %v114, %v118
      %v121 = vadd.f32 %v113, %v119
      %122 = vst [vmem:[#allocation3] sm:$0xff] %v121
    $region21: #{_mlp_streamed.7} parent=1 // pred_fallthru
      _
    // Predicated region
    $region22: #{_mlp_streamed.7} parent=1 // pred_check
      _
    $region23: #{_mlp_streamed.7} parent=1 // pred_check_branch
      %124 = sbr.rel (0) target = $region25
    $region24: #{_mlp_streamed.7} parent=1 // pred_region
      %s126 = ssub.s32 128, 128
      %127 = vsyncadd [#allocation4], %s126
      %s129 = sshll.u32 [#allocation3], 4
      %s130 = int_to_ptr.vmem [resolvable:$true] %s129
      %132 = dma.vmem_to_hbm [thread:$0]  %s130, 128, %s3, [#allocation4]
    $region25: #{_mlp_streamed.7} parent=1 // pred_fallthru
      _
    // Predicated region
    $region26: #{_mlp_streamed.7} parent=1 // pred_check
      _
    $region27: #{_mlp_streamed.7} parent=1 // pred_check_branch
      %134 = sbr.rel (0) target = $region29
    $region28: #{_mlp_streamed.7} parent=1 // pred_region
      %135 = dma.done [#allocation4], 128
    $region29: #{_mlp_streamed.7} parent=1 // pred_fallthru
      _
    %136 = vsyncpa [#allocation4], 1

// kernel: _mlp_streamed.4
$region0: #{_mlp_streamed.4}
  #allocation0 [shape = 'u32[]', space=smem, size = 0x4, offset = 0x4, fixed_abs, tag = 'smem constant byte address 0x4 - core index']
  #allocation1 [shape = 'u32[144,128]{1,0:T(1,128)}', space=vmem, size = 0x12000, scoped, tag = 'internal scratch']
  #allocation2 [shape = 'f32[8,128]{1,0:T(8,128)}', space=vmem, size = 0x1000, scoped, tag = 'scratch operand']
  %s0 = inlined_call_operand.vmem [shape: f32[8,128], index: 0, kind: input, shape index: {}]
  %s1 = inlined_call_operand.hbm [shape: f32[128,128], index: 1, kind: input, shape index: {}]
  %s2 = inlined_call_operand.hbm [shape: f32[1,128], index: 2, kind: input, shape index: {}]
  %s3 = inlined_call_operand.vmem [shape: f32[8,128], index: 3, kind: output, shape index: {}]
  %s4 = sld [smem:[#allocation0]]
  $region38: #{_mlp_streamed.4} parent=0
    _
  %s6 = ssub.s32 1, %s4
  %s7 = scalar_select 0, %s6, %s4
  $region1: #{_mlp_streamed.4} parent=0
    #allocation3 [shape = 'u8[65536]{0}', space=vmem, size = 0x10000, scoped, tag = 'input window, operand 1, single buffered']
    #allocation4 [shape = 's32[1]{0}', space=sflag, size = 0x4, scoped, tag = 'scoped memory for _mlp_streamed.4']
    #allocation5 [shape = 'u8[512]{0}', space=vmem, size = 0x400, scoped, tag = 'input window, operand 2, single buffered']
    #allocation6 [shape = 's32[1]{0}', space=sflag, size = 0x4, scoped, tag = 'scoped memory for _mlp_streamed.4']
    %8 = vsyncpa [#allocation4], 0
    %9 = vsyncpa [#allocation6], 0
    // Predicated region
    $region2: #{_mlp_streamed.4} parent=1 // pred_check
      _
    $region3: #{_mlp_streamed.4} parent=1 // pred_check_branch
      %11 = sbr.rel (0) target = $region5
    $region4: #{_mlp_streamed.4} parent=1 // pred_region
      _
    $region5: #{_mlp_streamed.4} parent=1 // pred_fallthru
      _
    // Predicated region
    $region6: #{_mlp_streamed.4} parent=1 // pred_check
      _
    $region7: #{_mlp_streamed.4} parent=1 // pred_check_branch
      %13 = sbr.rel (0) target = $region9
    $region8: #{_mlp_streamed.4} parent=1 // pred_region
      %s15 = ssub.s32 2048, 2048
      %16 = vsyncadd [#allocation4], %s15
      %s17 = sshll.u32 [#allocation3], 4
      %s18 = int_to_ptr.vmem [resolvable:$true] %s17
      %23 = dma.hbm_to_vmem [thread:$0]  %s1, 2048, %s18, [#allocation4], 128, 128, 8
    $region9: #{_mlp_streamed.4} parent=1 // pred_fallthru
      _
    // Predicated region
    $region10: #{_mlp_streamed.4} parent=1 // pred_check
      _
    $region11: #{_mlp_streamed.4} parent=1 // pred_check_branch
      %25 = sbr.rel (0) target = $region13
    $region12: #{_mlp_streamed.4} parent=1 // pred_region
      %s27 = ssub.s32 16, 16
      %28 = vsyncadd [#allocation6], %s27
      %s30 = sshll.u32 [#allocation5], 4
      %s31 = int_to_ptr.vmem [resolvable:$true] %s30
      %33 = dma.hbm_to_vmem [thread:$0]  %s2, 16, %s31, [#allocation6]
    $region13: #{_mlp_streamed.4} parent=1 // pred_fallthru
      _
    // Predicated region
    $region14: #{_mlp_streamed.4} parent=1 // pred_check
      _
    $region15: #{_mlp_streamed.4} parent=1 // pred_check_branch
      %35 = sbr.rel (0) target = $region17
    $region16: #{_mlp_streamed.4} parent=1 // pred_region
      %36 = dma.done [#allocation4], 2048
    $region17: #{_mlp_streamed.4} parent=1 // pred_fallthru
      _
    // Predicated region
    $region18: #{_mlp_streamed.4} parent=1 // pred_check
      _
    $region19: #{_mlp_streamed.4} parent=1 // pred_check_branch
      %38 = sbr.rel (0) target = $region21
    $region20: #{_mlp_streamed.4} parent=1 // pred_region
      %39 = dma.done [#allocation6], 16
    $region21: #{_mlp_streamed.4} parent=1 // pred_fallthru
      _
    %p40 = scmp.eq.s32.totalorder 0, 0
    // Predicated region
    $region22: #{_mlp_streamed.4} parent=1 // pred_check
      %p41 = pneg %p40
    $region23: #{_mlp_streamed.4} parent=1 // pred_check_branch
      %43 = sbr.rel (%p41) target = $region25
    $region24: #{_mlp_streamed.4} parent=1 // pred_region
      %44 = vst [vmem:[#allocation2] sm:$0xff] 0.0
    $region25: #{_mlp_streamed.4} parent=1 // pred_fallthru
      _
    %v45 = vld [vmem:[#allocation2] sm:$0xff]
    %v46 = vld [vmem:[%s0] sm:$0xff]
    %v47 = vld [vmem:[#allocation3] sm:$0xff]
    %v48 = vld [vmem:[#allocation3 + $0x8] sm:$0xff]
    %v49 = vld [vmem:[#allocation3 + $0x10] sm:$0xff]
    %v50 = vld [vmem:[#allocation3 + $0x18] sm:$0xff]
    %v51 = vld [vmem:[#allocation3 + $0x20] sm:$0xff]
    %v52 = vld [vmem:[#allocation3 + $0x28] sm:$0xff]
    %v53 = vld [vmem:[#allocation3 + $0x30] sm:$0xff]
    %v54 = vld [vmem:[#allocation3 + $0x38] sm:$0xff]
    %v55 = vld [vmem:[#allocation3 + $0x40] sm:$0xff]
    %v56 = vld [vmem:[#allocation3 + $0x48] sm:$0xff]
    %v57 = vld [vmem:[#allocation3 + $0x50] sm:$0xff]
    %v58 = vld [vmem:[#allocation3 + $0x58] sm:$0xff]
    %v59 = vld [vmem:[#allocation3 + $0x60] sm:$0xff]
    %v60 = vld [vmem:[#allocation3 + $0x68] sm:$0xff]
    %v61 = vld [vmem:[#allocation3 + $0x70] sm:$0xff]
    %v62 = vld [vmem:[#allocation3 + $0x78] sm:$0xff]
    %63 = vmatprep.subr.mxu0 0.0
    %64 = vmatpush1.msra.mxu0 %v47
    %65 = vmatprep.subr.mxu0 0.0
    %66 = vmatpush1.msra.mxu0 %v48
    %67 = vmatprep.subr.mxu0 0.0
    %68 = vmatpush1.msra.mxu0 %v49
    %69 = vmatprep.subr.mxu0 0.0
    %70 = vmatpush1.msra.mxu0 %v50
    %71 = vmatprep.subr.mxu0 0.0
    %72 = vmatpush1.msra.mxu0 %v51
    %73 = vmatprep.subr.mxu0 0.0
    %74 = vmatpush1.msra.mxu0 %v52
    %75 = vmatprep.subr.mxu0 0.0
    %76 = vmatpush1.msra.mxu0 %v53
    %77 = vmatprep.subr.mxu0 0.0
    %78 = vmatpush1.msra.mxu0 %v54
    %79 = vmatprep.subr.mxu0 0.0
    %80 = vmatpush1.msra.mxu0 %v55
    %81 = vmatprep.subr.mxu0 0.0
    %82 = vmatpush1.msra.mxu0 %v56
    %83 = vmatprep.subr.mxu0 0.0
    %84 = vmatpush1.msra.mxu0 %v57
    %85 = vmatprep.subr.mxu0 0.0
    %86 = vmatpush1.msra.mxu0 %v58
    %87 = vmatprep.subr.mxu0 0.0
    %88 = vmatpush1.msra.mxu0 %v59
    %89 = vmatprep.subr.mxu0 0.0
    %90 = vmatpush1.msra.mxu0 %v60
    %91 = vmatprep.subr.mxu0 0.0
    %92 = vmatpush1.msra.mxu0 %v61
    %93 = vmatprep.subr.mxu0 0.0
    %94 = vmatpush1.msra.mxu0 %v62
    %95 = vmatprep.subr.mxu0 0.0
    %96 = vmatpush1.msra.mxu0 0.0
    %97 = vmatprep.subr.mxu0 0.0
    %98 = vmatpush1.msra.mxu0 0.0
    %99 = vmatprep.subr.mxu0 0.0
    %100 = vmatpush1.msra.mxu0 0.0
    %101 = vmatprep.subr.mxu0 0.0
    %102 = vmatpush1.msra.mxu0 0.0
    %103 = vmatprep.subr.mxu0 0.0
    %104 = vmatpush1.msra.mxu0 0.0
    %105 = vmatprep.subr.mxu0 0.0
    %106 = vmatpush1.msra.mxu0 0.0
    %107 = vmatprep.subr.mxu0 0.0
    %108 = vmatpush1.msra.mxu0 0.0
    %109 = vmatprep.subr.mxu0 0.0
    %110 = vmatpush1.msra.mxu0 0.0
    %111 = vmatprep.subr.mxu0 0.0
    %112 = vmatpush1.msra.mxu0 0.0
    %113 = vmatprep.subr.mxu0 0.0
    %114 = vmatpush1.msra.mxu0 0.0
    %115 = vmatprep.subr.mxu0 0.0
    %116 = vmatpush1.msra.mxu0 0.0
    %117 = vmatprep.subr.mxu0 0.0
    %118 = vmatpush1.msra.mxu0 0.0
    %119 = vmatprep.subr.mxu0 0.0
    %120 = vmatpush1.msra.mxu0 0.0
    %121 = vmatprep.subr.mxu0 0.0
    %122 = vmatpush1.msra.mxu0 0.0
    %123 = vmatprep.subr.mxu0 0.0
    %124 = vmatpush1.msra.mxu0 0.0
    %125 = vmatprep.subr.mxu0 0.0
    %126 = vmatpush1.msra.mxu0 0.0
    %127 = vmatprep.mubr.f32.mxu0 0.0
    %128 = vmatmul.mubr.f32.gmra.mrb[0].mxu0 %v46
    %v129 = vpop.f32.mrb[0].mxu0
    %v130 = vadd.f32 0.0, %v129
    %v131 = vpop.f32.mrb[0].mxu0
    %132 = vdwg.mxu0
    %v133 = vadd.f32 %v45, %v130
    %134 = vst [vmem:[#allocation2] sm:$0xff] %v133
    // Predicated region
    $region26: #{_mlp_streamed.4} parent=1 // pred_check
      %p135 = pneg %p40
    $region27: #{_mlp_streamed.4} parent=1 // pred_check_branch
      %137 = sbr.rel (%p135) target = $region29
    $region28: #{_mlp_streamed.4} parent=1 // pred_region
      %v138 = vld [vmem:[#allocation2] sm:$0xff]
      %v139 = vld [vmem:[#allocation5] sm:$0x1]
      %v141 = vlaneseq
      %v142 = vshrl.u32 %v141, 7
      %v143 = vsub.s32 0, %v142
      %v144 = vrot.slane %v139, %v143
      %v146 = vadd.f32 %v138, %v144
      %v147 = vmax.f32 %v146, 0.0
      %148 = vst [vmem:[%s3] sm:$0xff] %v147
    $region29: #{_mlp_streamed.4} parent=1 // pred_fallthru
      _
    // Predicated region
    $region30: #{_mlp_streamed.4} parent=1 // pred_check
      _
    $region31: #{_mlp_streamed.4} parent=1 // pred_check_branch
      %150 = sbr.rel (0) target = $region33
    $region32: #{_mlp_streamed.4} parent=1 // pred_region
      _
    $region33: #{_mlp_streamed.4} parent=1 // pred_fallthru
      _
    // Predicated region
    $region34: #{_mlp_streamed.4} parent=1 // pred_check
      _
    $region35: #{_mlp_streamed.4} parent=1 // pred_check_branch
      %152 = sbr.rel (0) target = $region37
    $region36: #{_mlp_streamed.4} parent=1 // pred_region
      _
    $region37: #{_mlp_streamed.4} parent=1 // pred_fallthru
      _
    %153 = vsyncpa [#allocation4], 1
    %154 = vsyncpa [#allocation6], 1

</llo_original>
